<compile_context>
chip_gen: v5e
topology: v5e:2x2
jax: 0.10.0
libtpu: 0.0.40
codegen_flags: <defaults>
</compile_context>

<pallas_src>
import jax
import jax.numpy as jnp
from jax import lax
from jax.experimental import pallas as pl
from jax.experimental.pallas import tpu as pltpu


# --------------------------------------------------------------------------- #
# Kernel
# --------------------------------------------------------------------------- #
def _make_birnn_kernel(T, B, H):
    H2, H4, H6 = 2 * H, 4 * H, 6 * H

    def kernel(xc_ref,      # (T*B, 2D)  [x(t) | x(T-1-t)]  (step-ordered)
               wih_ref,     # (2D, 6H)   packed input weights (gate-major/dir-minor)
               whh_ref,     # (2H, 6H)   packed block-diagonal recurrent weights
               bin_ref,     # (1, 6H)    folded input-projection bias
               bhn_ref,     # (1, 2H)    n-gate recurrent bias [b_hn_f | b_hn_b]
               out_ref,     # (T*B, 2H)  step-ordered [h_f(s) | h_b(T-1-s)]
               hn_ref,      # (B, 2H)    final packed hidden [h_f(T-1) | h_b(0)]
               gi_ref):     # scratch (T*B, 6H)
        # ---- hoisted input projection: one MXU pass for both directions ----
        gi_ref[...] = (jnp.dot(xc_ref[...], wih_ref[...],
                               preferred_element_type=jnp.float32)
                       + bin_ref[...])

        whh = whh_ref[...]
        bhn = jnp.broadcast_to(bhn_ref[...], (B, H2))   # hoisted, no per-iter bcast

        def step(h, row):
            gi = gi_ref[pl.ds(row, B), :]                                 # (B, 6H)
            gh = jnp.dot(h, whh, preferred_element_type=jnp.float32)      # (B, 6H)
            # Fused sigmoid over [r_f|r_b|z_f|z_b] (2 full vregs, 2 EUP pushes).
            rz = jax.nn.sigmoid(gi[:, :H4] + gh[:, :H4])
            r, z = rz[:, :H2], rz[:, H2:]
            n = jnp.tanh(gi[:, H4:] + r * (gh[:, H4:] + bhn))             # (B, 2H)
            h_new = (1.0 - z) * n + z * h
            out_ref[pl.ds(row, B), :] = h_new          # dense 128-lane store
            return h_new

        h0 = jnp.zeros((B, H2), jnp.float32)
        if T <= 32:
            # Fully static time loop: every slice start is a compile-time
            # constant -> dense loads/stores, scheduler sees the whole chain.
            h = h0
            for s in range(T):
                h = step(h, s * B)
        else:
            # TODO(synk): for long sequences, stream x/gi/out with a
            # time-chunked grid (or pltpu.emit_pipeline) instead of holding
            # them fully resident in VMEM (v7x budget is 64 MiB/core).
            def body(s, h):
                return step(h, pl.multiple_of(s * B, B))
            h = lax.fori_loop(0, T, body, h0, unroll=8)

        hn_ref[...] = h

    return kernel


# --------------------------------------------------------------------------- #
# Wrapper-side weight packing (gate-major / direction-minor, block-diagonal)
# --------------------------------------------------------------------------- #
def _pack_params(params, D, H):
    f32 = jnp.float32

    def gate_blocks(w_t):                       # (K, 3H) -> (K, 3, H)
        return w_t.reshape(w_t.shape[0], 3, H)

    # Input weights: rows 0:D act on x(t) -> forward gate columns,
    # rows D:2D act on x(T-1-t) -> backward gate columns.
    wf = gate_blocks(params["w_ih_f"].T.astype(f32))
    wb = gate_blocks(params["w_ih_b"].T.astype(f32))
    zi = jnp.zeros_like(wf)
    wih = jnp.concatenate([
        jnp.stack([wf, zi], axis=2).reshape(D, 6 * H),
        jnp.stack([zi, wb], axis=2).reshape(D, 6 * H),
    ], axis=0)                                                   # (2D, 6H)

    # Recurrent weights: block-diagonal over direction, same column order, so
    # [h_f | h_b] @ whh == [r_f|r_b|z_f|z_b|n_f|n_b] recurrent contributions.
    uf = gate_blocks(params["w_hh_f"].T.astype(f32))
    ub = gate_blocks(params["w_hh_b"].T.astype(f32))
    zh = jnp.zeros_like(uf)
    whh = jnp.concatenate([
        jnp.stack([uf, zh], axis=2).reshape(H, 6 * H),
        jnp.stack([zh, ub], axis=2).reshape(H, 6 * H),
    ], axis=0)                                                   # (2H, 6H)

    # Biases: fold b_ih (all gates) + b_hh (r, z) into the hoisted projection;
    # the n-gate recurrent bias must stay separate (multiplied by the reset gate).
    def fold(b_ih, b_hh):
        return jnp.concatenate(
            [b_ih[:2 * H] + b_hh[:2 * H], b_ih[2 * H:]]).reshape(3, H)

    b_in = jnp.stack([fold(params["b_ih_f"], params["b_hh_f"]),
                      fold(params["b_ih_b"], params["b_hh_b"])],
                     axis=1).reshape(1, 6 * H).astype(f32)       # (1, 6H)
    b_hn = jnp.concatenate([params["b_hh_f"][2 * H:],
                            params["b_hh_b"][2 * H:]]).reshape(1, 2 * H).astype(f32)
    return wih, whh, b_in, b_hn


def encode_birnn_forward(x, params):
    """x: (B, T, dim_in) float32 (batch-first). Returns (feature, global_feature)."""
    B, T, D = x.shape
    H = params["w_hh_f"].shape[1]
    H2 = 2 * H

    # x(t) and x(T-1-t) concatenated feature-wise so a single matmul produces
    # the per-step packed (forward@t, backward@T-1-t) input gates in step order.
    x_tm = jnp.transpose(x, (1, 0, 2)).astype(jnp.float32)        # (T, B, D)
    x_comb = jnp.concatenate([x_tm, x_tm[::-1]], axis=-1).reshape(T * B, 2 * D)

    wih, whh, b_in, b_hn = _pack_params(params, D, H)

    # Resident-footprint guard (no streaming path yet); keep well under the
    # v7x 64 MiB / core VMEM budget.
    resident = 4 * (T * B * (2 * D + 6 * H + H2) + 2 * D * 6 * H
                    + H2 * 6 * H + B * H2 + 8 * H)
    assert resident < 24 * 1024 * 1024, (
        "sequence too long for the fully-resident kernel; add a time-chunked grid")

    vmem = pl.BlockSpec(memory_space=pltpu.MemorySpace.VMEM)
    out_flat, hn = pl.pallas_call(
        _make_birnn_kernel(T, B, H),
        out_shape=(
            jax.ShapeDtypeStruct((T * B, H2), jnp.float32),  # [h_f(s)|h_b(T-1-s)]
            jax.ShapeDtypeStruct((B, H2), jnp.float32),      # final packed hidden
        ),
        in_specs=[vmem] * 5,
        out_specs=(vmem, vmem),
        scratch_shapes=[pltpu.VMEM((T * B, 6 * H), jnp.float32)],
        compiler_params=pltpu.CompilerParams(vmem_limit_bytes=32 * 1024 * 1024),
    )(x_comb, wih, whh, b_in, b_hn)

    # One-shot bulk split + time-reverse of the backward half (off the serial
    # critical path, plain XLA layout work).
    out3 = out_flat.reshape(T, B, H2)
    feature_tm = jnp.concatenate([out3[:, :, :H], out3[::-1, :, H:]], axis=-1)
    feature = jnp.transpose(feature_tm, (1, 0, 2))                # (B, T, 2H) == cn
    global_feature = hn.reshape(-1)        # == hn.permute(1, 0, 2).reshape(-1)
    return feature, global_feature


# --------------------------------------------------------------------------- #
# Deterministic synthetic parameters (PyTorch GRU shapes)
# --------------------------------------------------------------------------- #
def init_params(key, dim_in, hidden):
    scale = 1.0 / float(hidden) ** 0.5
    ks = jax.random.split(key, 8)

    def u(k, shape):
        return jax.random.uniform(k, shape, jnp.float32, -scale, scale)

    return dict(
        w_ih_f=u(ks[0], (3 * hidden, dim_in)),
        w_hh_f=u(ks[1], (3 * hidden, hidden)),
        b_ih_f=u(ks[2], (3 * hidden,)),
        b_hh_f=u(ks[3], (3 * hidden,)),
        w_ih_b=u(ks[4], (3 * hidden, dim_in)),
        w_hh_b=u(ks[5], (3 * hidden, hidden)),
        b_ih_b=u(ks[6], (3 * hidden,)),
        b_hh_b=u(ks[7], (3 * hidden,)),
    )


# ---------- pure-JAX reference (mirrors torch.nn.GRU bidirectional semantics) -
def _gru_dir_ref(x_tm, w_ih, w_hh, b_ih, b_hh, reverse):
    H = w_hh.shape[1]
    B = x_tm.shape[1]

    def cell(h, x_t):
        gi = jnp.dot(x_t, w_ih.T, precision=lax.Precision.HIGHEST) + b_ih
        gh = jnp.dot(h, w_hh.T, precision=lax.Precision.HIGHEST) + b_hh
        i_r, i_z, i_n = jnp.split(gi, 3, axis=-1)
        h_r, h_z, h_n = jnp.split(gh, 3, axis=-1)
        r = jax.nn.sigmoid(i_r + h_r)
        z = jax.nn.sigmoid(i_z + h_z)
        n = jnp.tanh(i_n + r * h_n)
        h_new = (1.0 - z) * n + z * h
        return h_new, h_new

    h0 = jnp.zeros((B, H), jnp.float32)
    h_last, outs = lax.scan(cell, h0, x_tm, reverse=reverse)
    return outs, h_last


def encode_birnn_reference(x, params):
    x_tm = jnp.transpose(x, (1, 0, 2)).astype(jnp.float32)
    out_f, h_f = _gru_dir_ref(x_tm, params["w_ih_f"], params["w_hh_f"],
                              params["b_ih_f"], params["b_hh_f"], reverse=False)
    out_b, h_b = _gru_dir_ref(x_tm, params["w_ih_b"], params["w_hh_b"],
                              params["b_ih_b"], params["b_hh_b"], reverse=True)
    out = jnp.concatenate([out_f, out_b], axis=-1)
    feature = jnp.transpose(out, (1, 0, 2))
    hn = jnp.stack([h_f, h_b], axis=0)
    global_feature = jnp.transpose(hn, (1, 0, 2)).reshape(-1)
    return feature, global_feature


if __name__ == "__main__":
    # Small shapes consistent with the module: dim_in=32, lstm_out=128 -> hidden=64
    B, T, DIM_IN, LSTM_OUT = 2, 8, 32, 128
    H = LSTM_OUT // 2

    key = jax.random.PRNGKey(0)
    kx, kp = jax.random.split(key)
    x = jax.random.normal(kx, (B, T, DIM_IN), jnp.float32)
    params = init_params(kp, DIM_IN, H)

    feature, global_feature = jax.jit(encode_birnn_forward)(x, params)
    jax.block_until_ready((feature, global_feature))

    ref_feat, ref_glob = encode_birnn_reference(x, params)
    assert feature.shape == (B, T, 2 * H), feature.shape
    assert global_feature.shape == (B * 2 * H,), global_feature.shape
    # Kernel uses the default MXU f32 path; reference uses HIGHEST precision.
    assert jnp.allclose(feature, ref_feat, atol=2e-3, rtol=2e-3)
    assert jnp.allclose(global_feature, ref_glob, atol=2e-3, rtol=2e-3)

    print("KERNEL_OK")
</pallas_src>

<mosaic_0001>
module attributes {stable_mosaic.version = 11 : i64} {
  func.func @kernel(%arg0: memref<16x64xf32, #tpu.memory_space<vmem>>, %arg1: memref<64x384xf32, #tpu.memory_space<vmem>>, %arg2: memref<128x384xf32, #tpu.memory_space<vmem>>, %arg3: memref<1x384xf32, #tpu.memory_space<vmem>>, %arg4: memref<1x128xf32, #tpu.memory_space<vmem>>, %arg5: memref<16x128xf32, #tpu.memory_space<vmem>>, %arg6: memref<2x128xf32, #tpu.memory_space<vmem>>, %arg7: memref<16x384xf32, #tpu.memory_space<vmem>>) attributes {dimension_semantics = [], scalar_prefetch = 0 : i64, scratch_operands = 1 : i64, tpu.core_type = #tpu.core_type<tc>} {
    %c0 = arith.constant 0 : index
    %c0_0 = arith.constant 0 : index
    %0 = vector.load %arg0[%c0, %c0_0] : memref<16x64xf32, #tpu.memory_space<vmem>>, vector<16x64xf32>
    %c0_1 = arith.constant 0 : index
    %c0_2 = arith.constant 0 : index
    %1 = vector.load %arg1[%c0_1, %c0_2] : memref<64x384xf32, #tpu.memory_space<vmem>>, vector<64x384xf32>
    %cst = arith.constant dense<0.000000e+00> : vector<16x384xf32>
    %2 = tpu.matmul %0, %1, %cst {dimension_numbers = #tpu.dot_dimension_numbers<[1], [0], [0], [1], [0, 0, 1, 1], [], []>} : vector<16x64xf32>, vector<64x384xf32>, vector<16x384xf32> -> vector<16x384xf32>
    %c0_3 = arith.constant 0 : index
    %c0_4 = arith.constant 0 : index
    %3 = vector.load %arg3[%c0_3, %c0_4] : memref<1x384xf32, #tpu.memory_space<vmem>>, vector<1x384xf32>
    %4 = vector.broadcast %3 : vector<1x384xf32> to vector<16x384xf32>
    %5 = arith.addf %2, %4 : vector<16x384xf32>
    %c0_5 = arith.constant 0 : index
    %c0_6 = arith.constant 0 : index
    %6 = vector.load %arg7[%c0_5, %c0_6] : memref<16x384xf32, #tpu.memory_space<vmem>>, vector<16x384xf32>
    tpu.vector_store %arg7[%c0_5, %c0_6], %5 {strides = array<i32>} : memref<16x384xf32, #tpu.memory_space<vmem>>, vector<16x384xf32>,
    %c0_7 = arith.constant 0 : index
    %c0_8 = arith.constant 0 : index
    %7 = vector.load %arg2[%c0_7, %c0_8] : memref<128x384xf32, #tpu.memory_space<vmem>>, vector<128x384xf32>
    %c0_9 = arith.constant 0 : index
    %c0_10 = arith.constant 0 : index
    %8 = vector.load %arg4[%c0_9, %c0_10] : memref<1x128xf32, #tpu.memory_space<vmem>>, vector<1x128xf32>
    %9 = vector.shape_cast %8 : vector<1x128xf32> to vector<1x128xf32>
    %10 = vector.broadcast %9 : vector<1x128xf32> to vector<2x128xf32>
    %cst_11 = arith.constant 0.000000e+00 : f32
    %11 = vector.broadcast %cst_11 : f32 to vector<2x128xf32>
    %c0_12 = arith.constant 0 : index
    %c0_13 = arith.constant 0 : index
    %12 = vector.load %arg7[%c0_12, %c0_13] : memref<16x384xf32, #tpu.memory_space<vmem>>, vector<2x384xf32>
    %cst_14 = arith.constant dense<0.000000e+00> : vector<2x384xf32>
    %13 = tpu.matmul %11, %7, %cst_14 {dimension_numbers = #tpu.dot_dimension_numbers<[1], [0], [0], [1], [0, 0, 1, 1], [], []>} : vector<2x128xf32>, vector<128x384xf32>, vector<2x384xf32> -> vector<2x384xf32>
    %14 = vector.extract_strided_slice %12 {offsets = [0, 0], sizes = [2, 256], strides = [1, 1]} : vector<2x384xf32> to vector<2x256xf32>
    %15 = vector.extract_strided_slice %13 {offsets = [0, 0], sizes = [2, 256], strides = [1, 1]} : vector<2x384xf32> to vector<2x256xf32>
    %16 = arith.addf %14, %15 : vector<2x256xf32>
    %17 = arith.negf %16 : vector<2x256xf32>
    %18 = math.exp %17 : vector<2x256xf32>
    %cst_15 = arith.constant 1.000000e+00 : f32
    %19 = vector.broadcast %cst_15 : f32 to vector<2x256xf32>
    %20 = arith.addf %19, %18 : vector<2x256xf32>
    %21 = arith.divf %19, %20 : vector<2x256xf32>
    %22 = vector.extract_strided_slice %21 {offsets = [0, 0], sizes = [2, 128], strides = [1, 1]} : vector<2x256xf32> to vector<2x128xf32>
    %23 = vector.extract_strided_slice %21 {offsets = [0, 128], sizes = [2, 128], strides = [1, 1]} : vector<2x256xf32> to vector<2x128xf32>
    %24 = vector.extract_strided_slice %12 {offsets = [0, 256], sizes = [2, 128], strides = [1, 1]} : vector<2x384xf32> to vector<2x128xf32>
    %25 = vector.extract_strided_slice %13 {offsets = [0, 256], sizes = [2, 128], strides = [1, 1]} : vector<2x384xf32> to vector<2x128xf32>
    %26 = arith.addf %25, %10 : vector<2x128xf32>
    %27 = arith.mulf %22, %26 : vector<2x128xf32>
    %28 = arith.addf %24, %27 : vector<2x128xf32>
    %29 = math.tanh %28 : vector<2x128xf32>
    %cst_16 = arith.constant 1.000000e+00 : f32
    %30 = vector.broadcast %cst_16 : f32 to vector<2x128xf32>
    %31 = arith.subf %30, %23 : vector<2x128xf32>
    %32 = arith.mulf %31, %29 : vector<2x128xf32>
    %33 = arith.mulf %23, %11 : vector<2x128xf32>
    %34 = arith.addf %32, %33 : vector<2x128xf32>
    %c0_17 = arith.constant 0 : index
    %c0_18 = arith.constant 0 : index
    %35 = vector.load %arg5[%c0_17, %c0_18] : memref<16x128xf32, #tpu.memory_space<vmem>>, vector<2x128xf32>
    tpu.vector_store %arg5[%c0_17, %c0_18], %34 {strides = array<i32>} : memref<16x128xf32, #tpu.memory_space<vmem>>, vector<2x128xf32>,
    %c2 = arith.constant 2 : index
    %c0_19 = arith.constant 0 : index
    %36 = vector.load %arg7[%c2, %c0_19] : memref<16x384xf32, #tpu.memory_space<vmem>>, vector<2x384xf32>
    %cst_20 = arith.constant dense<0.000000e+00> : vector<2x384xf32>
    %37 = tpu.matmul %34, %7, %cst_20 {dimension_numbers = #tpu.dot_dimension_numbers<[1], [0], [0], [1], [0, 0, 1, 1], [], []>} : vector<2x128xf32>, vector<128x384xf32>, vector<2x384xf32> -> vector<2x384xf32>
    %38 = vector.extract_strided_slice %36 {offsets = [0, 0], sizes = [2, 256], strides = [1, 1]} : vector<2x384xf32> to vector<2x256xf32>
    %39 = vector.extract_strided_slice %37 {offsets = [0, 0], sizes = [2, 256], strides = [1, 1]} : vector<2x384xf32> to vector<2x256xf32>
    %40 = arith.addf %38, %39 : vector<2x256xf32>
    %41 = arith.negf %40 : vector<2x256xf32>
    %42 = math.exp %41 : vector<2x256xf32>
    %cst_21 = arith.constant 1.000000e+00 : f32
    %43 = vector.broadcast %cst_21 : f32 to vector<2x256xf32>
    %44 = arith.addf %43, %42 : vector<2x256xf32>
    %45 = arith.divf %43, %44 : vector<2x256xf32>
    %46 = vector.extract_strided_slice %45 {offsets = [0, 0], sizes = [2, 128], strides = [1, 1]} : vector<2x256xf32> to vector<2x128xf32>
    %47 = vector.extract_strided_slice %45 {offsets = [0, 128], sizes = [2, 128], strides = [1, 1]} : vector<2x256xf32> to vector<2x128xf32>
    %48 = vector.extract_strided_slice %36 {offsets = [0, 256], sizes = [2, 128], strides = [1, 1]} : vector<2x384xf32> to vector<2x128xf32>
    %49 = vector.extract_strided_slice %37 {offsets = [0, 256], sizes = [2, 128], strides = [1, 1]} : vector<2x384xf32> to vector<2x128xf32>
    %50 = arith.addf %49, %10 : vector<2x128xf32>
    %51 = arith.mulf %46, %50 : vector<2x128xf32>
    %52 = arith.addf %48, %51 : vector<2x128xf32>
    %53 = math.tanh %52 : vector<2x128xf32>
    %cst_22 = arith.constant 1.000000e+00 : f32
    %54 = vector.broadcast %cst_22 : f32 to vector<2x128xf32>
    %55 = arith.subf %54, %47 : vector<2x128xf32>
    %56 = arith.mulf %55, %53 : vector<2x128xf32>
    %57 = arith.mulf %47, %34 : vector<2x128xf32>
    %58 = arith.addf %56, %57 : vector<2x128xf32>
    %c2_23 = arith.constant 2 : index
    %c0_24 = arith.constant 0 : index
    %59 = vector.load %arg5[%c2_23, %c0_24] : memref<16x128xf32, #tpu.memory_space<vmem>>, vector<2x128xf32>
    tpu.vector_store %arg5[%c2_23, %c0_24], %58 {strides = array<i32>} : memref<16x128xf32, #tpu.memory_space<vmem>>, vector<2x128xf32>,
    %c4 = arith.constant 4 : index
    %c0_25 = arith.constant 0 : index
    %60 = vector.load %arg7[%c4, %c0_25] : memref<16x384xf32, #tpu.memory_space<vmem>>, vector<2x384xf32>
    %cst_26 = arith.constant dense<0.000000e+00> : vector<2x384xf32>
    %61 = tpu.matmul %58, %7, %cst_26 {dimension_numbers = #tpu.dot_dimension_numbers<[1], [0], [0], [1], [0, 0, 1, 1], [], []>} : vector<2x128xf32>, vector<128x384xf32>, vector<2x384xf32> -> vector<2x384xf32>
    %62 = vector.extract_strided_slice %60 {offsets = [0, 0], sizes = [2, 256], strides = [1, 1]} : vector<2x384xf32> to vector<2x256xf32>
    %63 = vector.extract_strided_slice %61 {offsets = [0, 0], sizes = [2, 256], strides = [1, 1]} : vector<2x384xf32> to vector<2x256xf32>
    %64 = arith.addf %62, %63 : vector<2x256xf32>
    %65 = arith.negf %64 : vector<2x256xf32>
    %66 = math.exp %65 : vector<2x256xf32>
    %cst_27 = arith.constant 1.000000e+00 : f32
    %67 = vector.broadcast %cst_27 : f32 to vector<2x256xf32>
    %68 = arith.addf %67, %66 : vector<2x256xf32>
    %69 = arith.divf %67, %68 : vector<2x256xf32>
    %70 = vector.extract_strided_slice %69 {offsets = [0, 0], sizes = [2, 128], strides = [1, 1]} : vector<2x256xf32> to vector<2x128xf32>
    %71 = vector.extract_strided_slice %69 {offsets = [0, 128], sizes = [2, 128], strides = [1, 1]} : vector<2x256xf32> to vector<2x128xf32>
    %72 = vector.extract_strided_slice %60 {offsets = [0, 256], sizes = [2, 128], strides = [1, 1]} : vector<2x384xf32> to vector<2x128xf32>
    %73 = vector.extract_strided_slice %61 {offsets = [0, 256], sizes = [2, 128], strides = [1, 1]} : vector<2x384xf32> to vector<2x128xf32>
    %74 = arith.addf %73, %10 : vector<2x128xf32>
    %75 = arith.mulf %70, %74 : vector<2x128xf32>
    %76 = arith.addf %72, %75 : vector<2x128xf32>
    %77 = math.tanh %76 : vector<2x128xf32>
    %cst_28 = arith.constant 1.000000e+00 : f32
    %78 = vector.broadcast %cst_28 : f32 to vector<2x128xf32>
    %79 = arith.subf %78, %71 : vector<2x128xf32>
    %80 = arith.mulf %79, %77 : vector<2x128xf32>
    %81 = arith.mulf %71, %58 : vector<2x128xf32>
    %82 = arith.addf %80, %81 : vector<2x128xf32>
    %c4_29 = arith.constant 4 : index
    %c0_30 = arith.constant 0 : index
    %83 = vector.load %arg5[%c4_29, %c0_30] : memref<16x128xf32, #tpu.memory_space<vmem>>, vector<2x128xf32>
    tpu.vector_store %arg5[%c4_29, %c0_30], %82 {strides = array<i32>} : memref<16x128xf32, #tpu.memory_space<vmem>>, vector<2x128xf32>,
    %c6 = arith.constant 6 : index
    %c0_31 = arith.constant 0 : index
    %84 = vector.load %arg7[%c6, %c0_31] : memref<16x384xf32, #tpu.memory_space<vmem>>, vector<2x384xf32>
    %cst_32 = arith.constant dense<0.000000e+00> : vector<2x384xf32>
    %85 = tpu.matmul %82, %7, %cst_32 {dimension_numbers = #tpu.dot_dimension_numbers<[1], [0], [0], [1], [0, 0, 1, 1], [], []>} : vector<2x128xf32>, vector<128x384xf32>, vector<2x384xf32> -> vector<2x384xf32>
    %86 = vector.extract_strided_slice %84 {offsets = [0, 0], sizes = [2, 256], strides = [1, 1]} : vector<2x384xf32> to vector<2x256xf32>
    %87 = vector.extract_strided_slice %85 {offsets = [0, 0], sizes = [2, 256], strides = [1, 1]} : vector<2x384xf32> to vector<2x256xf32>
    %88 = arith.addf %86, %87 : vector<2x256xf32>
    %89 = arith.negf %88 : vector<2x256xf32>
    %90 = math.exp %89 : vector<2x256xf32>
    %cst_33 = arith.constant 1.000000e+00 : f32
    %91 = vector.broadcast %cst_33 : f32 to vector<2x256xf32>
    %92 = arith.addf %91, %90 : vector<2x256xf32>
    %93 = arith.divf %91, %92 : vector<2x256xf32>
    %94 = vector.extract_strided_slice %93 {offsets = [0, 0], sizes = [2, 128], strides = [1, 1]} : vector<2x256xf32> to vector<2x128xf32>
    %95 = vector.extract_strided_slice %93 {offsets = [0, 128], sizes = [2, 128], strides = [1, 1]} : vector<2x256xf32> to vector<2x128xf32>
    %96 = vector.extract_strided_slice %84 {offsets = [0, 256], sizes = [2, 128], strides = [1, 1]} : vector<2x384xf32> to vector<2x128xf32>
    %97 = vector.extract_strided_slice %85 {offsets = [0, 256], sizes = [2, 128], strides = [1, 1]} : vector<2x384xf32> to vector<2x128xf32>
    %98 = arith.addf %97, %10 : vector<2x128xf32>
    %99 = arith.mulf %94, %98 : vector<2x128xf32>
    %100 = arith.addf %96, %99 : vector<2x128xf32>
    %101 = math.tanh %100 : vector<2x128xf32>
    %cst_34 = arith.constant 1.000000e+00 : f32
    %102 = vector.broadcast %cst_34 : f32 to vector<2x128xf32>
    %103 = arith.subf %102, %95 : vector<2x128xf32>
    %104 = arith.mulf %103, %101 : vector<2x128xf32>
    %105 = arith.mulf %95, %82 : vector<2x128xf32>
    %106 = arith.addf %104, %105 : vector<2x128xf32>
    %c6_35 = arith.constant 6 : index
    %c0_36 = arith.constant 0 : index
    %107 = vector.load %arg5[%c6_35, %c0_36] : memref<16x128xf32, #tpu.memory_space<vmem>>, vector<2x128xf32>
    tpu.vector_store %arg5[%c6_35, %c0_36], %106 {strides = array<i32>} : memref<16x128xf32, #tpu.memory_space<vmem>>, vector<2x128xf32>,
    %c8 = arith.constant 8 : index
    %c0_37 = arith.constant 0 : index
    %108 = vector.load %arg7[%c8, %c0_37] : memref<16x384xf32, #tpu.memory_space<vmem>>, vector<2x384xf32>
    %cst_38 = arith.constant dense<0.000000e+00> : vector<2x384xf32>
    %109 = tpu.matmul %106, %7, %cst_38 {dimension_numbers = #tpu.dot_dimension_numbers<[1], [0], [0], [1], [0, 0, 1, 1], [], []>} : vector<2x128xf32>, vector<128x384xf32>, vector<2x384xf32> -> vector<2x384xf32>
    %110 = vector.extract_strided_slice %108 {offsets = [0, 0], sizes = [2, 256], strides = [1, 1]} : vector<2x384xf32> to vector<2x256xf32>
    %111 = vector.extract_strided_slice %109 {offsets = [0, 0], sizes = [2, 256], strides = [1, 1]} : vector<2x384xf32> to vector<2x256xf32>
    %112 = arith.addf %110, %111 : vector<2x256xf32>
    %113 = arith.negf %112 : vector<2x256xf32>
    %114 = math.exp %113 : vector<2x256xf32>
    %cst_39 = arith.constant 1.000000e+00 : f32
    %115 = vector.broadcast %cst_39 : f32 to vector<2x256xf32>
    %116 = arith.addf %115, %114 : vector<2x256xf32>
    %117 = arith.divf %115, %116 : vector<2x256xf32>
    %118 = vector.extract_strided_slice %117 {offsets = [0, 0], sizes = [2, 128], strides = [1, 1]} : vector<2x256xf32> to vector<2x128xf32>
    %119 = vector.extract_strided_slice %117 {offsets = [0, 128], sizes = [2, 128], strides = [1, 1]} : vector<2x256xf32> to vector<2x128xf32>
    %120 = vector.extract_strided_slice %108 {offsets = [0, 256], sizes = [2, 128], strides = [1, 1]} : vector<2x384xf32> to vector<2x128xf32>
    %121 = vector.extract_strided_slice %109 {offsets = [0, 256], sizes = [2, 128], strides = [1, 1]} : vector<2x384xf32> to vector<2x128xf32>
    %122 = arith.addf %121, %10 : vector<2x128xf32>
    %123 = arith.mulf %118, %122 : vector<2x128xf32>
    %124 = arith.addf %120, %123 : vector<2x128xf32>
    %125 = math.tanh %124 : vector<2x128xf32>
    %cst_40 = arith.constant 1.000000e+00 : f32
    %126 = vector.broadcast %cst_40 : f32 to vector<2x128xf32>
    %127 = arith.subf %126, %119 : vector<2x128xf32>
    %128 = arith.mulf %127, %125 : vector<2x128xf32>
    %129 = arith.mulf %119, %106 : vector<2x128xf32>
    %130 = arith.addf %128, %129 : vector<2x128xf32>
    %c8_41 = arith.constant 8 : index
    %c0_42 = arith.constant 0 : index
    %131 = vector.load %arg5[%c8_41, %c0_42] : memref<16x128xf32, #tpu.memory_space<vmem>>, vector<2x128xf32>
    tpu.vector_store %arg5[%c8_41, %c0_42], %130 {strides = array<i32>} : memref<16x128xf32, #tpu.memory_space<vmem>>, vector<2x128xf32>,
    %c10 = arith.constant 10 : index
    %c0_43 = arith.constant 0 : index
    %132 = vector.load %arg7[%c10, %c0_43] : memref<16x384xf32, #tpu.memory_space<vmem>>, vector<2x384xf32>
    %cst_44 = arith.constant dense<0.000000e+00> : vector<2x384xf32>
    %133 = tpu.matmul %130, %7, %cst_44 {dimension_numbers = #tpu.dot_dimension_numbers<[1], [0], [0], [1], [0, 0, 1, 1], [], []>} : vector<2x128xf32>, vector<128x384xf32>, vector<2x384xf32> -> vector<2x384xf32>
    %134 = vector.extract_strided_slice %132 {offsets = [0, 0], sizes = [2, 256], strides = [1, 1]} : vector<2x384xf32> to vector<2x256xf32>
    %135 = vector.extract_strided_slice %133 {offsets = [0, 0], sizes = [2, 256], strides = [1, 1]} : vector<2x384xf32> to vector<2x256xf32>
    %136 = arith.addf %134, %135 : vector<2x256xf32>
    %137 = arith.negf %136 : vector<2x256xf32>
    %138 = math.exp %137 : vector<2x256xf32>
    %cst_45 = arith.constant 1.000000e+00 : f32
    %139 = vector.broadcast %cst_45 : f32 to vector<2x256xf32>
    %140 = arith.addf %139, %138 : vector<2x256xf32>
    %141 = arith.divf %139, %140 : vector<2x256xf32>
    %142 = vector.extract_strided_slice %141 {offsets = [0, 0], sizes = [2, 128], strides = [1, 1]} : vector<2x256xf32> to vector<2x128xf32>
    %143 = vector.extract_strided_slice %141 {offsets = [0, 128], sizes = [2, 128], strides = [1, 1]} : vector<2x256xf32> to vector<2x128xf32>
    %144 = vector.extract_strided_slice %132 {offsets = [0, 256], sizes = [2, 128], strides = [1, 1]} : vector<2x384xf32> to vector<2x128xf32>
    %145 = vector.extract_strided_slice %133 {offsets = [0, 256], sizes = [2, 128], strides = [1, 1]} : vector<2x384xf32> to vector<2x128xf32>
    %146 = arith.addf %145, %10 : vector<2x128xf32>
    %147 = arith.mulf %142, %146 : vector<2x128xf32>
    %148 = arith.addf %144, %147 : vector<2x128xf32>
    %149 = math.tanh %148 : vector<2x128xf32>
    %cst_46 = arith.constant 1.000000e+00 : f32
    %150 = vector.broadcast %cst_46 : f32 to vector<2x128xf32>
    %151 = arith.subf %150, %143 : vector<2x128xf32>
    %152 = arith.mulf %151, %149 : vector<2x128xf32>
    %153 = arith.mulf %143, %130 : vector<2x128xf32>
    %154 = arith.addf %152, %153 : vector<2x128xf32>
    %c10_47 = arith.constant 10 : index
    %c0_48 = arith.constant 0 : index
    %155 = vector.load %arg5[%c10_47, %c0_48] : memref<16x128xf32, #tpu.memory_space<vmem>>, vector<2x128xf32>
    tpu.vector_store %arg5[%c10_47, %c0_48], %154 {strides = array<i32>} : memref<16x128xf32, #tpu.memory_space<vmem>>, vector<2x128xf32>,
    %c12 = arith.constant 12 : index
    %c0_49 = arith.constant 0 : index
    %156 = vector.load %arg7[%c12, %c0_49] : memref<16x384xf32, #tpu.memory_space<vmem>>, vector<2x384xf32>
    %cst_50 = arith.constant dense<0.000000e+00> : vector<2x384xf32>
    %157 = tpu.matmul %154, %7, %cst_50 {dimension_numbers = #tpu.dot_dimension_numbers<[1], [0], [0], [1], [0, 0, 1, 1], [], []>} : vector<2x128xf32>, vector<128x384xf32>, vector<2x384xf32> -> vector<2x384xf32>
    %158 = vector.extract_strided_slice %156 {offsets = [0, 0], sizes = [2, 256], strides = [1, 1]} : vector<2x384xf32> to vector<2x256xf32>
    %159 = vector.extract_strided_slice %157 {offsets = [0, 0], sizes = [2, 256], strides = [1, 1]} : vector<2x384xf32> to vector<2x256xf32>
    %160 = arith.addf %158, %159 : vector<2x256xf32>
    %161 = arith.negf %160 : vector<2x256xf32>
    %162 = math.exp %161 : vector<2x256xf32>
    %cst_51 = arith.constant 1.000000e+00 : f32
    %163 = vector.broadcast %cst_51 : f32 to vector<2x256xf32>
    %164 = arith.addf %163, %162 : vector<2x256xf32>
    %165 = arith.divf %163, %164 : vector<2x256xf32>
    %166 = vector.extract_strided_slice %165 {offsets = [0, 0], sizes = [2, 128], strides = [1, 1]} : vector<2x256xf32> to vector<2x128xf32>
    %167 = vector.extract_strided_slice %165 {offsets = [0, 128], sizes = [2, 128], strides = [1, 1]} : vector<2x256xf32> to vector<2x128xf32>
    %168 = vector.extract_strided_slice %156 {offsets = [0, 256], sizes = [2, 128], strides = [1, 1]} : vector<2x384xf32> to vector<2x128xf32>
    %169 = vector.extract_strided_slice %157 {offsets = [0, 256], sizes = [2, 128], strides = [1, 1]} : vector<2x384xf32> to vector<2x128xf32>
    %170 = arith.addf %169, %10 : vector<2x128xf32>
    %171 = arith.mulf %166, %170 : vector<2x128xf32>
    %172 = arith.addf %168, %171 : vector<2x128xf32>
    %173 = math.tanh %172 : vector<2x128xf32>
    %cst_52 = arith.constant 1.000000e+00 : f32
    %174 = vector.broadcast %cst_52 : f32 to vector<2x128xf32>
    %175 = arith.subf %174, %167 : vector<2x128xf32>
    %176 = arith.mulf %175, %173 : vector<2x128xf32>
    %177 = arith.mulf %167, %154 : vector<2x128xf32>
    %178 = arith.addf %176, %177 : vector<2x128xf32>
    %c12_53 = arith.constant 12 : index
    %c0_54 = arith.constant 0 : index
    %179 = vector.load %arg5[%c12_53, %c0_54] : memref<16x128xf32, #tpu.memory_space<vmem>>, vector<2x128xf32>
    tpu.vector_store %arg5[%c12_53, %c0_54], %178 {strides = array<i32>} : memref<16x128xf32, #tpu.memory_space<vmem>>, vector<2x128xf32>,
    %c14 = arith.constant 14 : index
    %c0_55 = arith.constant 0 : index
    %180 = vector.load %arg7[%c14, %c0_55] : memref<16x384xf32, #tpu.memory_space<vmem>>, vector<2x384xf32>
    %cst_56 = arith.constant dense<0.000000e+00> : vector<2x384xf32>
    %181 = tpu.matmul %178, %7, %cst_56 {dimension_numbers = #tpu.dot_dimension_numbers<[1], [0], [0], [1], [0, 0, 1, 1], [], []>} : vector<2x128xf32>, vector<128x384xf32>, vector<2x384xf32> -> vector<2x384xf32>
    %182 = vector.extract_strided_slice %180 {offsets = [0, 0], sizes = [2, 256], strides = [1, 1]} : vector<2x384xf32> to vector<2x256xf32>
    %183 = vector.extract_strided_slice %181 {offsets = [0, 0], sizes = [2, 256], strides = [1, 1]} : vector<2x384xf32> to vector<2x256xf32>
    %184 = arith.addf %182, %183 : vector<2x256xf32>
    %185 = arith.negf %184 : vector<2x256xf32>
    %186 = math.exp %185 : vector<2x256xf32>
    %cst_57 = arith.constant 1.000000e+00 : f32
    %187 = vector.broadcast %cst_57 : f32 to vector<2x256xf32>
    %188 = arith.addf %187, %186 : vector<2x256xf32>
    %189 = arith.divf %187, %188 : vector<2x256xf32>
    %190 = vector.extract_strided_slice %189 {offsets = [0, 0], sizes = [2, 128], strides = [1, 1]} : vector<2x256xf32> to vector<2x128xf32>
    %191 = vector.extract_strided_slice %189 {offsets = [0, 128], sizes = [2, 128], strides = [1, 1]} : vector<2x256xf32> to vector<2x128xf32>
    %192 = vector.extract_strided_slice %180 {offsets = [0, 256], sizes = [2, 128], strides = [1, 1]} : vector<2x384xf32> to vector<2x128xf32>
    %193 = vector.extract_strided_slice %181 {offsets = [0, 256], sizes = [2, 128], strides = [1, 1]} : vector<2x384xf32> to vector<2x128xf32>
    %194 = arith.addf %193, %10 : vector<2x128xf32>
    %195 = arith.mulf %190, %194 : vector<2x128xf32>
    %196 = arith.addf %192, %195 : vector<2x128xf32>
    %197 = math.tanh %196 : vector<2x128xf32>
    %cst_58 = arith.constant 1.000000e+00 : f32
    %198 = vector.broadcast %cst_58 : f32 to vector<2x128xf32>
    %199 = arith.subf %198, %191 : vector<2x128xf32>
    %200 = arith.mulf %199, %197 : vector<2x128xf32>
    %201 = arith.mulf %191, %178 : vector<2x128xf32>
    %202 = arith.addf %200, %201 : vector<2x128xf32>
    %c14_59 = arith.constant 14 : index
    %c0_60 = arith.constant 0 : index
    %203 = vector.load %arg5[%c14_59, %c0_60] : memref<16x128xf32, #tpu.memory_space<vmem>>, vector<2x128xf32>
    tpu.vector_store %arg5[%c14_59, %c0_60], %202 {strides = array<i32>} : memref<16x128xf32, #tpu.memory_space<vmem>>, vector<2x128xf32>,
    %c0_61 = arith.constant 0 : index
    %c0_62 = arith.constant 0 : index
    %204 = vector.load %arg6[%c0_61, %c0_62] : memref<2x128xf32, #tpu.memory_space<vmem>>, vector<2x128xf32>
    tpu.vector_store %arg6[%c0_61, %c0_62], %202 {strides = array<i32>} : memref<2x128xf32, #tpu.memory_space<vmem>>, vector<2x128xf32>,
    return
  }
}

</mosaic_0001>

<llo_original>
// kernel: encode_birnn_forward.1
$region0: #{encode_birnn_forward.1}
  #allocation0 [shape = 'u32[]', space=smem, size = 0x4, offset = 0x4, fixed_abs, tag = 'smem constant byte address 0x4 - core index']
  #allocation1 [shape = 'u32[72,128]{1,0:T(1,128)}', space=vmem, size = 0x9000, scoped, tag = 'internal scratch']
  #allocation2 [shape = 'f32[16,384]{1,0:T(8,128)}', space=vmem, size = 0x6000, scoped, tag = 'scratch operand']
  %s0 = inlined_call_operand.vmem [shape: f32[16,64], index: 0, kind: input, shape index: {}]
  %s1 = inlined_call_operand.vmem [shape: f32[64,384], index: 1, kind: input, shape index: {}]
  %s2 = inlined_call_operand.vmem [shape: f32[128,384], index: 2, kind: input, shape index: {}]
  %s3 = inlined_call_operand.vmem [shape: f32[1,384], index: 3, kind: input, shape index: {}]
  %s4 = inlined_call_operand.vmem [shape: f32[1,128], index: 4, kind: input, shape index: {}]
  %s5 = inlined_call_operand.vmem [shape: f32[16,128], index: 5, kind: output, shape index: {0}]
  %s6 = inlined_call_operand.hbm [shape: f32[2,128], index: 6, kind: output, shape index: {1}]
  %7 = xla_tuple %s5, %s6
  %s8 = sld [smem:[#allocation0]]
  $region38: #{encode_birnn_forward.1} parent=0
    _
  %s10 = ssub.s32 1, %s8
  %s11 = scalar_select 0, %s10, %s8
  $region1: #{encode_birnn_forward.1} parent=0
    #allocation3 [shape = 'u8[1024]{0}', space=vmem, size = 0x400, scoped, tag = 'output window, operand 1, single buffered']
    #allocation4 [shape = 's32[1]{0}', space=sflag, size = 0x4, scoped, tag = 'scoped memory for encode_birnn_forward.1']
    %12 = vsyncpa [#allocation4], 0
    // Predicated region
    $region2: #{encode_birnn_forward.1} parent=1 // pred_check
      _
    $region3: #{encode_birnn_forward.1} parent=1 // pred_check_branch
      %14 = sbr.rel (0) target = $region5
    $region4: #{encode_birnn_forward.1} parent=1 // pred_region
      _
    $region5: #{encode_birnn_forward.1} parent=1 // pred_fallthru
      _
    // Predicated region
    $region6: #{encode_birnn_forward.1} parent=1 // pred_check
      _
    $region7: #{encode_birnn_forward.1} parent=1 // pred_check_branch
      %16 = sbr.rel (0) target = $region9
    $region8: #{encode_birnn_forward.1} parent=1 // pred_region
      _
    $region9: #{encode_birnn_forward.1} parent=1 // pred_fallthru
      _
    // Predicated region
    $region10: #{encode_birnn_forward.1} parent=1 // pred_check
      _
    $region11: #{encode_birnn_forward.1} parent=1 // pred_check_branch
      %18 = sbr.rel (0) target = $region13
    $region12: #{encode_birnn_forward.1} parent=1 // pred_region
      _
    $region13: #{encode_birnn_forward.1} parent=1 // pred_fallthru
      _
    // Predicated region
    $region14: #{encode_birnn_forward.1} parent=1 // pred_check
      _
    $region15: #{encode_birnn_forward.1} parent=1 // pred_check_branch
      %20 = sbr.rel (0) target = $region17
    $region16: #{encode_birnn_forward.1} parent=1 // pred_region
      _
    $region17: #{encode_birnn_forward.1} parent=1 // pred_fallthru
      _
    // Predicated region
    $region18: #{encode_birnn_forward.1} parent=1 // pred_check
      _
    $region19: #{encode_birnn_forward.1} parent=1 // pred_check_branch
      %22 = sbr.rel (0) target = $region21
    $region20: #{encode_birnn_forward.1} parent=1 // pred_region
      _
    $region21: #{encode_birnn_forward.1} parent=1 // pred_fallthru
      _
    %v23 = vld [vmem:[%s0] sm:$0xff]
    %v24 = vld [vmem:[%s0 + $0x8] sm:$0xff]
    %v25 = vld [vmem:[%s1] sm:$0xff]
    %v26 = vld [vmem:[%s1 + $0x8] sm:$0xff]
    %v27 = vld [vmem:[%s1 + $0x10] sm:$0xff]
    %v28 = vld [vmem:[%s1 + $0x18] sm:$0xff]
    %v29 = vld [vmem:[%s1 + $0x20] sm:$0xff]
    %v30 = vld [vmem:[%s1 + $0x28] sm:$0xff]
    %v31 = vld [vmem:[%s1 + $0x30] sm:$0xff]
    %v32 = vld [vmem:[%s1 + $0x38] sm:$0xff]
    %v33 = vld [vmem:[%s1 + $0x40] sm:$0xff]
    %v34 = vld [vmem:[%s1 + $0x48] sm:$0xff]
    %v35 = vld [vmem:[%s1 + $0x50] sm:$0xff]
    %v36 = vld [vmem:[%s1 + $0x58] sm:$0xff]
    %v37 = vld [vmem:[%s1 + $0x60] sm:$0xff]
    %v38 = vld [vmem:[%s1 + $0x68] sm:$0xff]
    %v39 = vld [vmem:[%s1 + $0x70] sm:$0xff]
    %v40 = vld [vmem:[%s1 + $0x78] sm:$0xff]
    %v41 = vld [vmem:[%s1 + $0x80] sm:$0xff]
    %v42 = vld [vmem:[%s1 + $0x88] sm:$0xff]
    %v43 = vld [vmem:[%s1 + $0x90] sm:$0xff]
    %v44 = vld [vmem:[%s1 + $0x98] sm:$0xff]
    %v45 = vld [vmem:[%s1 + $0xa0] sm:$0xff]
    %v46 = vld [vmem:[%s1 + $0xa8] sm:$0xff]
    %v47 = vld [vmem:[%s1 + $0xb0] sm:$0xff]
    %v48 = vld [vmem:[%s1 + $0xb8] sm:$0xff]
    %v49 = vld [vmem:[%s3] sm:$0x7]
    %v51 = vperm.slane %v49, 0
    %v52 = vperm.slane %v49, 1
    %v53 = vperm.slane %v49, 2
    %vm57 = vcmask 523264
    %v59 = vsel %vm57, %v23, 0
    %v62 = vsel %vm57, %v24, 0
    %64 = vmatpush.msra.mxu0 0.0
    %65 = vmatpush.msra.mxu0 0.0
    %66 = vmatpush.msra.mxu0 0.0
    %67 = vmatpush.msra.mxu0 0.0
    %68 = vmatpush.msra.mxu0 0.0
    %69 = vmatpush.msra.mxu0 0.0
    %70 = vmatpush.msra.mxu0 0.0
    %71 = vmatpush.msra.mxu0 0.0
    %72 = vmatpush.msra.mxu0 %v46
    %73 = vmatpush.msra.mxu0 %v43
    %74 = vmatpush.msra.mxu0 %v40
    %75 = vmatpush.msra.mxu0 %v37
    %76 = vmatpush.msra.mxu0 %v34
    %77 = vmatpush.msra.mxu0 %v31
    %78 = vmatpush.msra.mxu0 %v28
    %79 = vmatpush.msra.mxu0 %v25
    %80 = vmatmul.f32.gmra.mxu0 %v59
    %v81 = vpop.f32.mrf.mxu0
    %v82 = vadd.f32 %v51, %v81
    %83 = vmatmul.f32.gmra.mxu0 %v62
    %v84 = vpop.f32.mrf.mxu0
    %v85 = vadd.f32 %v51, %v84
    %86 = vdwg.mxu0
    %87 = vmatpush.msra.mxu0 0.0
    %88 = vmatpush.msra.mxu0 0.0
    %89 = vmatpush.msra.mxu0 0.0
    %90 = vmatpush.msra.mxu0 0.0
    %91 = vmatpush.msra.mxu0 0.0
    %92 = vmatpush.msra.mxu0 0.0
    %93 = vmatpush.msra.mxu0 0.0
    %94 = vmatpush.msra.mxu0 0.0
    %95 = vmatpush.msra.mxu0 %v47
    %96 = vmatpush.msra.mxu0 %v44
    %97 = vmatpush.msra.mxu0 %v41
    %98 = vmatpush.msra.mxu0 %v38
    %99 = vmatpush.msra.mxu0 %v35
    %100 = vmatpush.msra.mxu0 %v32
    %101 = vmatpush.msra.mxu0 %v29
    %102 = vmatpush.msra.mxu0 %v26
    %103 = vmatmul.f32.gmra.mxu0 %v59
    %v104 = vpop.f32.mrf.mxu0
    %v105 = vadd.f32 %v52, %v104
    %106 = vmatmul.f32.gmra.mxu0 %v62
    %v107 = vpop.f32.mrf.mxu0
    %v108 = vadd.f32 %v52, %v107
    %109 = vdwg.mxu0
    %110 = vmatpush.msra.mxu0 0.0
    %111 = vmatpush.msra.mxu0 0.0
    %112 = vmatpush.msra.mxu0 0.0
    %113 = vmatpush.msra.mxu0 0.0
    %114 = vmatpush.msra.mxu0 0.0
    %115 = vmatpush.msra.mxu0 0.0
    %116 = vmatpush.msra.mxu0 0.0
    %117 = vmatpush.msra.mxu0 0.0
    %118 = vmatpush.msra.mxu0 %v48
    %119 = vmatpush.msra.mxu0 %v45
    %120 = vmatpush.msra.mxu0 %v42
    %121 = vmatpush.msra.mxu0 %v39
    %122 = vmatpush.msra.mxu0 %v36
    %123 = vmatpush.msra.mxu0 %v33
    %124 = vmatpush.msra.mxu0 %v30
    %125 = vmatpush.msra.mxu0 %v27
    %126 = vmatmul.f32.gmra.mxu0 %v59
    %v127 = vpop.f32.mrf.mxu0
    %v128 = vadd.f32 %v53, %v127
    %129 = vmatmul.f32.gmra.mxu0 %v62
    %v130 = vpop.f32.mrf.mxu0
    %v131 = vadd.f32 %v53, %v130
    %132 = vdwg.mxu0
    %133 = vst [vmem:[#allocation2] sm:$0xff] %v82
    %134 = vst [vmem:[#allocation2 + $0x8] sm:$0xff] %v105
    %135 = vst [vmem:[#allocation2 + $0x10] sm:$0xff] %v128
    %136 = vst [vmem:[#allocation2 + $0x18] sm:$0xff] %v85
    %137 = vst [vmem:[#allocation2 + $0x20] sm:$0xff] %v108
    %138 = vst [vmem:[#allocation2 + $0x28] sm:$0xff] %v131
    %v139 = vld [vmem:[%s2] sm:$0xff]
    %v140 = vld [vmem:[%s2 + $0x8] sm:$0xff]
    %v141 = vld [vmem:[%s2 + $0x10] sm:$0xff]
    %v142 = vld [vmem:[%s2 + $0x18] sm:$0xff]
    %v143 = vld [vmem:[%s2 + $0x20] sm:$0xff]
    %v144 = vld [vmem:[%s2 + $0x28] sm:$0xff]
    %v145 = vld [vmem:[%s2 + $0x30] sm:$0xff]
    %v146 = vld [vmem:[%s2 + $0x38] sm:$0xff]
    %v147 = vld [vmem:[%s2 + $0x40] sm:$0xff]
    %v148 = vld [vmem:[%s2 + $0x48] sm:$0xff]
    %v149 = vld [vmem:[%s2 + $0x50] sm:$0xff]
    %v150 = vld [vmem:[%s2 + $0x58] sm:$0xff]
    %v151 = vld [vmem:[%s2 + $0x60] sm:$0xff]
    %v152 = vld [vmem:[%s2 + $0x68] sm:$0xff]
    %v153 = vld [vmem:[%s2 + $0x70] sm:$0xff]
    %v154 = vld [vmem:[%s2 + $0x78] sm:$0xff]
    %v155 = vld [vmem:[%s2 + $0x80] sm:$0xff]
    %v156 = vld [vmem:[%s2 + $0x88] sm:$0xff]
    %v157 = vld [vmem:[%s2 + $0x90] sm:$0xff]
    %v158 = vld [vmem:[%s2 + $0x98] sm:$0xff]
    %v159 = vld [vmem:[%s2 + $0xa0] sm:$0xff]
    %v160 = vld [vmem:[%s2 + $0xa8] sm:$0xff]
    %v161 = vld [vmem:[%s2 + $0xb0] sm:$0xff]
    %v162 = vld [vmem:[%s2 + $0xb8] sm:$0xff]
    %v163 = vld [vmem:[%s2 + $0xc0] sm:$0xff]
    %v164 = vld [vmem:[%s2 + $0xc8] sm:$0xff]
    %v165 = vld [vmem:[%s2 + $0xd0] sm:$0xff]
    %v166 = vld [vmem:[%s2 + $0xd8] sm:$0xff]
    %v167 = vld [vmem:[%s2 + $0xe0] sm:$0xff]
    %v168 = vld [vmem:[%s2 + $0xe8] sm:$0xff]
    %v169 = vld [vmem:[%s2 + $0xf0] sm:$0xff]
    %v170 = vld [vmem:[%s2 + $0xf8] sm:$0xff]
    %v171 = vld [vmem:[%s2 + $0x100] sm:$0xff]
    %v172 = vld [vmem:[%s2 + $0x108] sm:$0xff]
    %v173 = vld [vmem:[%s2 + $0x110] sm:$0xff]
    %v174 = vld [vmem:[%s2 + $0x118] sm:$0xff]
    %v175 = vld [vmem:[%s2 + $0x120] sm:$0xff]
    %v176 = vld [vmem:[%s2 + $0x128] sm:$0xff]
    %v177 = vld [vmem:[%s2 + $0x130] sm:$0xff]
    %v178 = vld [vmem:[%s2 + $0x138] sm:$0xff]
    %v179 = vld [vmem:[%s2 + $0x140] sm:$0xff]
    %v180 = vld [vmem:[%s2 + $0x148] sm:$0xff]
    %v181 = vld [vmem:[%s2 + $0x150] sm:$0xff]
    %v182 = vld [vmem:[%s2 + $0x158] sm:$0xff]
    %v183 = vld [vmem:[%s2 + $0x160] sm:$0xff]
    %v184 = vld [vmem:[%s2 + $0x168] sm:$0xff]
    %v185 = vld [vmem:[%s2 + $0x170] sm:$0xff]
    %v186 = vld [vmem:[%s2 + $0x178] sm:$0xff]
    %v187 = vld [vmem:[%s4] sm:$0x1]
    %v189 = vperm.slane %v187, 0
    %v191 = vld [vmem:[#allocation2] sm:$0x3]
    %v192 = vld [vmem:[#allocation2 + $0x8] sm:$0x3]
    %v193 = vld [vmem:[#allocation2 + $0x10] sm:$0x3]
    %194 = vmatpush.msra.mxu0 %v184
    %195 = vmatpush.msra.mxu0 %v181
    %196 = vmatpush.msra.mxu0 %v178
    %197 = vmatpush.msra.mxu0 %v175
    %198 = vmatpush.msra.mxu0 %v172
    %199 = vmatpush.msra.mxu0 %v169
    %200 = vmatpush.msra.mxu0 %v166
    %201 = vmatpush.msra.mxu0 %v163
    %202 = vmatpush.msra.mxu0 %v160
    %203 = vmatpush.msra.mxu0 %v157
    %204 = vmatpush.msra.mxu0 %v154
    %205 = vmatpush.msra.mxu0 %v151
    %206 = vmatpush.msra.mxu0 %v148
    %207 = vmatpush.msra.mxu0 %v145
    %208 = vmatpush.msra.mxu0 %v142
    %209 = vmatpush.msra.mxu0 %v139
    %210 = vmatmul.f32.gmra.mxu0 0.0
    %v211 = vpop.f32.mrf.mxu0
    %v212 = vadd.f32 0.0, %v211
    %213 = vdwg.mxu0
    %214 = vmatpush.msra.mxu0 %v185
    %215 = vmatpush.msra.mxu0 %v182
    %216 = vmatpush.msra.mxu0 %v179
    %217 = vmatpush.msra.mxu0 %v176
    %218 = vmatpush.msra.mxu0 %v173
    %219 = vmatpush.msra.mxu0 %v170
    %220 = vmatpush.msra.mxu0 %v167
    %221 = vmatpush.msra.mxu0 %v164
    %222 = vmatpush.msra.mxu0 %v161
    %223 = vmatpush.msra.mxu0 %v158
    %224 = vmatpush.msra.mxu0 %v155
    %225 = vmatpush.msra.mxu0 %v152
    %226 = vmatpush.msra.mxu0 %v149
    %227 = vmatpush.msra.mxu0 %v146
    %228 = vmatpush.msra.mxu0 %v143
    %229 = vmatpush.msra.mxu0 %v140
    %230 = vmatmul.f32.gmra.mxu0 0.0
    %v231 = vpop.f32.mrf.mxu0
    %v232 = vadd.f32 0.0, %v231
    %233 = vdwg.mxu0
    %234 = vmatpush.msra.mxu0 %v186
    %235 = vmatpush.msra.mxu0 %v183
    %236 = vmatpush.msra.mxu0 %v180
    %237 = vmatpush.msra.mxu0 %v177
    %238 = vmatpush.msra.mxu0 %v174
    %239 = vmatpush.msra.mxu0 %v171
    %240 = vmatpush.msra.mxu0 %v168
    %241 = vmatpush.msra.mxu0 %v165
    %242 = vmatpush.msra.mxu0 %v162
    %243 = vmatpush.msra.mxu0 %v159
    %244 = vmatpush.msra.mxu0 %v156
    %245 = vmatpush.msra.mxu0 %v153
    %246 = vmatpush.msra.mxu0 %v150
    %247 = vmatpush.msra.mxu0 %v147
    %248 = vmatpush.msra.mxu0 %v144
    %249 = vmatpush.msra.mxu0 %v141
    %250 = vmatmul.f32.gmra.mxu0 0.0
    %v251 = vpop.f32.mrf.mxu0
    %v252 = vadd.f32 0.0, %v251
    %253 = vdwg.mxu0
    %v254 = vadd.f32 %v191, %v212
    %v255 = vadd.f32 %v192, %v232
    %v256 = vxor.u32 %v254, 2147483648
    %v257 = vxor.u32 %v255, 2147483648
    %v258 = vmul.f32 %v256, 1.442695
    %v259 = vpow.pop %v258
    %v260 = vmul.f32 %v257, 1.442695
    %v261 = vpow.pop %v260
    %v262 = vadd.f32 %v259, 1.0
    %v263 = vadd.f32 %v261, 1.0
    %v264 = vrcp.pop %v262
    %v265 = vmul.f32 %v262, %v264
    %v266 = vsub.f32 1.0, %v265
    %v267 = vmul.f32 %v264, %v266
    %v268 = vadd.f32 %v264, %v267
    %vm269 = vweird.f32 %v262
    %vm270 = vweird.f32 %v264
    %vm271 = vmor %vm269, %vm270
    %v272 = vsel %vm271, %v264, %v268
    %v273 = vand.u32 2147483647, %v262
    %vm274 = vcmp.eq.f32.partialorder %v273, 8.507059e+37
    %v275 = vand.u32 %v262, 2147483648
    %v276 = vor.u32 1.1754944e-38, %v275
    %v277 = vsel %vm274, %v276, %v272
    %v278 = vmul.f32 1.0, %v277
    %v279 = vrcp.pop %v263
    %v280 = vmul.f32 %v263, %v279
    %v281 = vsub.f32 1.0, %v280
    %v282 = vmul.f32 %v279, %v281
    %v283 = vadd.f32 %v279, %v282
    %vm284 = vweird.f32 %v263
    %vm285 = vweird.f32 %v279
    %vm286 = vmor %vm284, %vm285
    %v287 = vsel %vm286, %v279, %v283
    %v288 = vand.u32 2147483647, %v263
    %vm289 = vcmp.eq.f32.partialorder %v288, 8.507059e+37
    %v290 = vand.u32 %v263, 2147483648
    %v291 = vor.u32 1.1754944e-38, %v290
    %v292 = vsel %vm289, %v291, %v287
    %v293 = vmul.f32 1.0, %v292
    %v294 = vadd.f32 %v252, %v189
    %v295 = vmul.f32 %v278, %v294
    %v296 = vadd.f32 %v193, %v295
    %v297 = vtanh.pop %v296
    %v298 = vsub.f32 1.0, %v293
    %v299 = vmul.f32 %v298, %v297
    %v300 = vmul.f32 %v293, 0.0
    %v301 = vadd.f32 %v299, %v300
    %302 = vst [vmem:[%s5] sm:$0x3] %v301
    %v303 = vld [vmem:[#allocation2] sm:$0xc]
    %v304 = vld [vmem:[#allocation2 + $0x8] sm:$0xc]
    %v305 = vld [vmem:[#allocation2 + $0x10] sm:$0xc]
    %306 = vmatpush.msra.mxu0 %v184
    %307 = vmatpush.msra.mxu0 %v181
    %308 = vmatpush.msra.mxu0 %v178
    %309 = vmatpush.msra.mxu0 %v175
    %310 = vmatpush.msra.mxu0 %v172
    %311 = vmatpush.msra.mxu0 %v169
    %312 = vmatpush.msra.mxu0 %v166
    %313 = vmatpush.msra.mxu0 %v163
    %314 = vmatpush.msra.mxu0 %v160
    %315 = vmatpush.msra.mxu0 %v157
    %316 = vmatpush.msra.mxu0 %v154
    %317 = vmatpush.msra.mxu0 %v151
    %318 = vmatpush.msra.mxu0 %v148
    %319 = vmatpush.msra.mxu0 %v145
    %320 = vmatpush.msra.mxu0 %v142
    %321 = vmatpush.msra.mxu0 %v139
    %322 = vmatmul.f32.gmra.mxu0 %v301
    %v323 = vpop.f32.mrf.mxu0
    %v324 = vadd.f32 0.0, %v323
    %325 = vdwg.mxu0
    %326 = vmatpush.msra.mxu0 %v185
    %327 = vmatpush.msra.mxu0 %v182
    %328 = vmatpush.msra.mxu0 %v179
    %329 = vmatpush.msra.mxu0 %v176
    %330 = vmatpush.msra.mxu0 %v173
    %331 = vmatpush.msra.mxu0 %v170
    %332 = vmatpush.msra.mxu0 %v167
    %333 = vmatpush.msra.mxu0 %v164
    %334 = vmatpush.msra.mxu0 %v161
    %335 = vmatpush.msra.mxu0 %v158
    %336 = vmatpush.msra.mxu0 %v155
    %337 = vmatpush.msra.mxu0 %v152
    %338 = vmatpush.msra.mxu0 %v149
    %339 = vmatpush.msra.mxu0 %v146
    %340 = vmatpush.msra.mxu0 %v143
    %341 = vmatpush.msra.mxu0 %v140
    %342 = vmatmul.f32.gmra.mxu0 %v301
    %v343 = vpop.f32.mrf.mxu0
    %v344 = vadd.f32 0.0, %v343
    %345 = vdwg.mxu0
    %346 = vmatpush.msra.mxu0 %v186
    %347 = vmatpush.msra.mxu0 %v183
    %348 = vmatpush.msra.mxu0 %v180
    %349 = vmatpush.msra.mxu0 %v177
    %350 = vmatpush.msra.mxu0 %v174
    %351 = vmatpush.msra.mxu0 %v171
    %352 = vmatpush.msra.mxu0 %v168
    %353 = vmatpush.msra.mxu0 %v165
    %354 = vmatpush.msra.mxu0 %v162
    %355 = vmatpush.msra.mxu0 %v159
    %356 = vmatpush.msra.mxu0 %v156
    %357 = vmatpush.msra.mxu0 %v153
    %358 = vmatpush.msra.mxu0 %v150
    %359 = vmatpush.msra.mxu0 %v147
    %360 = vmatpush.msra.mxu0 %v144
    %361 = vmatpush.msra.mxu0 %v141
    %362 = vmatmul.f32.gmra.mxu0 %v301
    %v363 = vpop.f32.mrf.mxu0
    %v364 = vadd.f32 0.0, %v363
    %365 = vdwg.mxu0
    %v368 = vrot.slane %v324, 6
    %v369 = vrot.slane %v344, 6
    %v372 = vadd.f32 %v303, %v368
    %v373 = vadd.f32 %v304, %v369
    %v374 = vxor.u32 %v372, 2147483648
    %v375 = vxor.u32 %v373, 2147483648
    %v376 = vmul.f32 %v374, 1.442695
    %v377 = vpow.pop %v376
    %v378 = vmul.f32 %v375, 1.442695
    %v379 = vpow.pop %v378
    %v380 = vadd.f32 %v377, 1.0
    %v381 = vadd.f32 %v379, 1.0
    %v382 = vrcp.pop %v380
    %v383 = vmul.f32 %v380, %v382
    %v384 = vsub.f32 1.0, %v383
    %v385 = vmul.f32 %v382, %v384
    %v386 = vadd.f32 %v382, %v385
    %vm387 = vweird.f32 %v380
    %vm388 = vweird.f32 %v382
    %vm389 = vmor %vm387, %vm388
    %v390 = vsel %vm389, %v382, %v386
    %v391 = vand.u32 2147483647, %v380
    %vm392 = vcmp.eq.f32.partialorder %v391, 8.507059e+37
    %v393 = vand.u32 %v380, 2147483648
    %v394 = vor.u32 1.1754944e-38, %v393
    %v395 = vsel %vm392, %v394, %v390
    %v396 = vmul.f32 1.0, %v395
    %v397 = vrcp.pop %v381
    %v398 = vmul.f32 %v381, %v397
    %v399 = vsub.f32 1.0, %v398
    %v400 = vmul.f32 %v397, %v399
    %v401 = vadd.f32 %v397, %v400
    %vm402 = vweird.f32 %v381
    %vm403 = vweird.f32 %v397
    %vm404 = vmor %vm402, %vm403
    %v405 = vsel %vm404, %v397, %v401
    %v406 = vand.u32 2147483647, %v381
    %vm407 = vcmp.eq.f32.partialorder %v406, 8.507059e+37
    %v408 = vand.u32 %v381, 2147483648
    %v409 = vor.u32 1.1754944e-38, %v408
    %v410 = vsel %vm407, %v409, %v405
    %v411 = vmul.f32 1.0, %v410
    %v412 = vadd.f32 %v364, %v189
    %v414 = vrot.slane %v412, 6
    %v416 = vmul.f32 %v396, %v414
    %v417 = vadd.f32 %v305, %v416
    %v418 = vtanh.pop %v417
    %v419 = vsub.f32 1.0, %v411
    %v420 = vmul.f32 %v419, %v418
    %v422 = vrot.slane %v301, 6
    %v424 = vmul.f32 %v411, %v422
    %v425 = vadd.f32 %v420, %v424
    %426 = vst [vmem:[%s5] sm:$0xc] %v425
    %v427 = vld [vmem:[#allocation2] sm:$0x30]
    %v428 = vld [vmem:[#allocation2 + $0x8] sm:$0x30]
    %v429 = vld [vmem:[#allocation2 + $0x10] sm:$0x30]
    %v431 = vrot.slane %v425, 2
    %433 = vmatpush.msra.mxu0 %v184
    %434 = vmatpush.msra.mxu0 %v181
    %435 = vmatpush.msra.mxu0 %v178
    %436 = vmatpush.msra.mxu0 %v175
    %437 = vmatpush.msra.mxu0 %v172
    %438 = vmatpush.msra.mxu0 %v169
    %439 = vmatpush.msra.mxu0 %v166
    %440 = vmatpush.msra.mxu0 %v163
    %441 = vmatpush.msra.mxu0 %v160
    %442 = vmatpush.msra.mxu0 %v157
    %443 = vmatpush.msra.mxu0 %v154
    %444 = vmatpush.msra.mxu0 %v151
    %445 = vmatpush.msra.mxu0 %v148
    %446 = vmatpush.msra.mxu0 %v145
    %447 = vmatpush.msra.mxu0 %v142
    %448 = vmatpush.msra.mxu0 %v139
    %449 = vmatmul.f32.gmra.mxu0 %v431
    %v450 = vpop.f32.mrf.mxu0
    %v451 = vadd.f32 0.0, %v450
    %452 = vdwg.mxu0
    %453 = vmatpush.msra.mxu0 %v185
    %454 = vmatpush.msra.mxu0 %v182
    %455 = vmatpush.msra.mxu0 %v179
    %456 = vmatpush.msra.mxu0 %v176
    %457 = vmatpush.msra.mxu0 %v173
    %458 = vmatpush.msra.mxu0 %v170
    %459 = vmatpush.msra.mxu0 %v167
    %460 = vmatpush.msra.mxu0 %v164
    %461 = vmatpush.msra.mxu0 %v161
    %462 = vmatpush.msra.mxu0 %v158
    %463 = vmatpush.msra.mxu0 %v155
    %464 = vmatpush.msra.mxu0 %v152
    %465 = vmatpush.msra.mxu0 %v149
    %466 = vmatpush.msra.mxu0 %v146
    %467 = vmatpush.msra.mxu0 %v143
    %468 = vmatpush.msra.mxu0 %v140
    %469 = vmatmul.f32.gmra.mxu0 %v431
    %v470 = vpop.f32.mrf.mxu0
    %v471 = vadd.f32 0.0, %v470
    %472 = vdwg.mxu0
    %473 = vmatpush.msra.mxu0 %v186
    %474 = vmatpush.msra.mxu0 %v183
    %475 = vmatpush.msra.mxu0 %v180
    %476 = vmatpush.msra.mxu0 %v177
    %477 = vmatpush.msra.mxu0 %v174
    %478 = vmatpush.msra.mxu0 %v171
    %479 = vmatpush.msra.mxu0 %v168
    %480 = vmatpush.msra.mxu0 %v165
    %481 = vmatpush.msra.mxu0 %v162
    %482 = vmatpush.msra.mxu0 %v159
    %483 = vmatpush.msra.mxu0 %v156
    %484 = vmatpush.msra.mxu0 %v153
    %485 = vmatpush.msra.mxu0 %v150
    %486 = vmatpush.msra.mxu0 %v147
    %487 = vmatpush.msra.mxu0 %v144
    %488 = vmatpush.msra.mxu0 %v141
    %489 = vmatmul.f32.gmra.mxu0 %v431
    %v490 = vpop.f32.mrf.mxu0
    %v491 = vadd.f32 0.0, %v490
    %492 = vdwg.mxu0
    %v495 = vrot.slane %v451, 4
    %v496 = vrot.slane %v471, 4
    %v499 = vadd.f32 %v427, %v495
    %v500 = vadd.f32 %v428, %v496
    %v501 = vxor.u32 %v499, 2147483648
    %v502 = vxor.u32 %v500, 2147483648
    %v503 = vmul.f32 %v501, 1.442695
    %v504 = vpow.pop %v503
    %v505 = vmul.f32 %v502, 1.442695
    %v506 = vpow.pop %v505
    %v507 = vadd.f32 %v504, 1.0
    %v508 = vadd.f32 %v506, 1.0
    %v509 = vrcp.pop %v507
    %v510 = vmul.f32 %v507, %v509
    %v511 = vsub.f32 1.0, %v510
    %v512 = vmul.f32 %v509, %v511
    %v513 = vadd.f32 %v509, %v512
    %vm514 = vweird.f32 %v507
    %vm515 = vweird.f32 %v509
    %vm516 = vmor %vm514, %vm515
    %v517 = vsel %vm516, %v509, %v513
    %v518 = vand.u32 2147483647, %v507
    %vm519 = vcmp.eq.f32.partialorder %v518, 8.507059e+37
    %v520 = vand.u32 %v507, 2147483648
    %v521 = vor.u32 1.1754944e-38, %v520
    %v522 = vsel %vm519, %v521, %v517
    %v523 = vmul.f32 1.0, %v522
    %v524 = vrcp.pop %v508
    %v525 = vmul.f32 %v508, %v524
    %v526 = vsub.f32 1.0, %v525
    %v527 = vmul.f32 %v524, %v526
    %v528 = vadd.f32 %v524, %v527
    %vm529 = vweird.f32 %v508
    %vm530 = vweird.f32 %v524
    %vm531 = vmor %vm529, %vm530
    %v532 = vsel %vm531, %v524, %v528
    %v533 = vand.u32 2147483647, %v508
    %vm534 = vcmp.eq.f32.partialorder %v533, 8.507059e+37
    %v535 = vand.u32 %v508, 2147483648
    %v536 = vor.u32 1.1754944e-38, %v535
    %v537 = vsel %vm534, %v536, %v532
    %v538 = vmul.f32 1.0, %v537
    %v539 = vadd.f32 %v491, %v189
    %v541 = vrot.slane %v539, 4
    %v543 = vmul.f32 %v523, %v541
    %v544 = vadd.f32 %v429, %v543
    %v545 = vtanh.pop %v544
    %v546 = vsub.f32 1.0, %v538
    %v547 = vmul.f32 %v546, %v545
    %v548 = vrot.slane %v425, 6
    %v550 = vmul.f32 %v538, %v548
    %v551 = vadd.f32 %v547, %v550
    %552 = vst [vmem:[%s5] sm:$0x30] %v551
    %v553 = vld [vmem:[#allocation2] sm:$0xc0]
    %v554 = vld [vmem:[#allocation2 + $0x8] sm:$0xc0]
    %v555 = vld [vmem:[#allocation2 + $0x10] sm:$0xc0]
    %v557 = vrot.slane %v551, 4
    %559 = vmatpush.msra.mxu0 %v184
    %560 = vmatpush.msra.mxu0 %v181
    %561 = vmatpush.msra.mxu0 %v178
    %562 = vmatpush.msra.mxu0 %v175
    %563 = vmatpush.msra.mxu0 %v172
    %564 = vmatpush.msra.mxu0 %v169
    %565 = vmatpush.msra.mxu0 %v166
    %566 = vmatpush.msra.mxu0 %v163
    %567 = vmatpush.msra.mxu0 %v160
    %568 = vmatpush.msra.mxu0 %v157
    %569 = vmatpush.msra.mxu0 %v154
    %570 = vmatpush.msra.mxu0 %v151
    %571 = vmatpush.msra.mxu0 %v148
    %572 = vmatpush.msra.mxu0 %v145
    %573 = vmatpush.msra.mxu0 %v142
    %574 = vmatpush.msra.mxu0 %v139
    %575 = vmatmul.f32.gmra.mxu0 %v557
    %v576 = vpop.f32.mrf.mxu0
    %v577 = vadd.f32 0.0, %v576
    %578 = vdwg.mxu0
    %579 = vmatpush.msra.mxu0 %v185
    %580 = vmatpush.msra.mxu0 %v182
    %581 = vmatpush.msra.mxu0 %v179
    %582 = vmatpush.msra.mxu0 %v176
    %583 = vmatpush.msra.mxu0 %v173
    %584 = vmatpush.msra.mxu0 %v170
    %585 = vmatpush.msra.mxu0 %v167
    %586 = vmatpush.msra.mxu0 %v164
    %587 = vmatpush.msra.mxu0 %v161
    %588 = vmatpush.msra.mxu0 %v158
    %589 = vmatpush.msra.mxu0 %v155
    %590 = vmatpush.msra.mxu0 %v152
    %591 = vmatpush.msra.mxu0 %v149
    %592 = vmatpush.msra.mxu0 %v146
    %593 = vmatpush.msra.mxu0 %v143
    %594 = vmatpush.msra.mxu0 %v140
    %595 = vmatmul.f32.gmra.mxu0 %v557
    %v596 = vpop.f32.mrf.mxu0
    %v597 = vadd.f32 0.0, %v596
    %598 = vdwg.mxu0
    %599 = vmatpush.msra.mxu0 %v186
    %600 = vmatpush.msra.mxu0 %v183
    %601 = vmatpush.msra.mxu0 %v180
    %602 = vmatpush.msra.mxu0 %v177
    %603 = vmatpush.msra.mxu0 %v174
    %604 = vmatpush.msra.mxu0 %v171
    %605 = vmatpush.msra.mxu0 %v168
    %606 = vmatpush.msra.mxu0 %v165
    %607 = vmatpush.msra.mxu0 %v162
    %608 = vmatpush.msra.mxu0 %v159
    %609 = vmatpush.msra.mxu0 %v156
    %610 = vmatpush.msra.mxu0 %v153
    %611 = vmatpush.msra.mxu0 %v150
    %612 = vmatpush.msra.mxu0 %v147
    %613 = vmatpush.msra.mxu0 %v144
    %614 = vmatpush.msra.mxu0 %v141
    %615 = vmatmul.f32.gmra.mxu0 %v557
    %v616 = vpop.f32.mrf.mxu0
    %v617 = vadd.f32 0.0, %v616
    %618 = vdwg.mxu0
    %v621 = vrot.slane %v577, 2
    %v622 = vrot.slane %v597, 2
    %v625 = vadd.f32 %v553, %v621
    %v626 = vadd.f32 %v554, %v622
    %v627 = vxor.u32 %v625, 2147483648
    %v628 = vxor.u32 %v626, 2147483648
    %v629 = vmul.f32 %v627, 1.442695
    %v630 = vpow.pop %v629
    %v631 = vmul.f32 %v628, 1.442695
    %v632 = vpow.pop %v631
    %v633 = vadd.f32 %v630, 1.0
    %v634 = vadd.f32 %v632, 1.0
    %v635 = vrcp.pop %v633
    %v636 = vmul.f32 %v633, %v635
    %v637 = vsub.f32 1.0, %v636
    %v638 = vmul.f32 %v635, %v637
    %v639 = vadd.f32 %v635, %v638
    %vm640 = vweird.f32 %v633
    %vm641 = vweird.f32 %v635
    %vm642 = vmor %vm640, %vm641
    %v643 = vsel %vm642, %v635, %v639
    %v644 = vand.u32 2147483647, %v633
    %vm645 = vcmp.eq.f32.partialorder %v644, 8.507059e+37
    %v646 = vand.u32 %v633, 2147483648
    %v647 = vor.u32 1.1754944e-38, %v646
    %v648 = vsel %vm645, %v647, %v643
    %v649 = vmul.f32 1.0, %v648
    %v650 = vrcp.pop %v634
    %v651 = vmul.f32 %v634, %v650
    %v652 = vsub.f32 1.0, %v651
    %v653 = vmul.f32 %v650, %v652
    %v654 = vadd.f32 %v650, %v653
    %vm655 = vweird.f32 %v634
    %vm656 = vweird.f32 %v650
    %vm657 = vmor %vm655, %vm656
    %v658 = vsel %vm657, %v650, %v654
    %v659 = vand.u32 2147483647, %v634
    %vm660 = vcmp.eq.f32.partialorder %v659, 8.507059e+37
    %v661 = vand.u32 %v634, 2147483648
    %v662 = vor.u32 1.1754944e-38, %v661
    %v663 = vsel %vm660, %v662, %v658
    %v664 = vmul.f32 1.0, %v663
    %v665 = vadd.f32 %v617, %v189
    %v667 = vrot.slane %v665, 2
    %v669 = vmul.f32 %v649, %v667
    %v670 = vadd.f32 %v555, %v669
    %v671 = vtanh.pop %v670
    %v672 = vsub.f32 1.0, %v664
    %v673 = vmul.f32 %v672, %v671
    %v674 = vrot.slane %v551, 6
    %v676 = vmul.f32 %v664, %v674
    %v677 = vadd.f32 %v673, %v676
    %678 = vst [vmem:[%s5] sm:$0xc0] %v677
    %v679 = vld [vmem:[#allocation2 + $0x18] sm:$0x3]
    %v680 = vld [vmem:[#allocation2 + $0x20] sm:$0x3]
    %v681 = vld [vmem:[#allocation2 + $0x28] sm:$0x3]
    %v683 = vrot.slane %v677, 6
    %685 = vmatpush.msra.mxu0 %v184
    %686 = vmatpush.msra.mxu0 %v181
    %687 = vmatpush.msra.mxu0 %v178
    %688 = vmatpush.msra.mxu0 %v175
    %689 = vmatpush.msra.mxu0 %v172
    %690 = vmatpush.msra.mxu0 %v169
    %691 = vmatpush.msra.mxu0 %v166
    %692 = vmatpush.msra.mxu0 %v163
    %693 = vmatpush.msra.mxu0 %v160
    %694 = vmatpush.msra.mxu0 %v157
    %695 = vmatpush.msra.mxu0 %v154
    %696 = vmatpush.msra.mxu0 %v151
    %697 = vmatpush.msra.mxu0 %v148
    %698 = vmatpush.msra.mxu0 %v145
    %699 = vmatpush.msra.mxu0 %v142
    %700 = vmatpush.msra.mxu0 %v139
    %701 = vmatmul.f32.gmra.mxu0 %v683
    %v702 = vpop.f32.mrf.mxu0
    %v703 = vadd.f32 0.0, %v702
    %704 = vdwg.mxu0
    %705 = vmatpush.msra.mxu0 %v185
    %706 = vmatpush.msra.mxu0 %v182
    %707 = vmatpush.msra.mxu0 %v179
    %708 = vmatpush.msra.mxu0 %v176
    %709 = vmatpush.msra.mxu0 %v173
    %710 = vmatpush.msra.mxu0 %v170
    %711 = vmatpush.msra.mxu0 %v167
    %712 = vmatpush.msra.mxu0 %v164
    %713 = vmatpush.msra.mxu0 %v161
    %714 = vmatpush.msra.mxu0 %v158
    %715 = vmatpush.msra.mxu0 %v155
    %716 = vmatpush.msra.mxu0 %v152
    %717 = vmatpush.msra.mxu0 %v149
    %718 = vmatpush.msra.mxu0 %v146
    %719 = vmatpush.msra.mxu0 %v143
    %720 = vmatpush.msra.mxu0 %v140
    %721 = vmatmul.f32.gmra.mxu0 %v683
    %v722 = vpop.f32.mrf.mxu0
    %v723 = vadd.f32 0.0, %v722
    %724 = vdwg.mxu0
    %725 = vmatpush.msra.mxu0 %v186
    %726 = vmatpush.msra.mxu0 %v183
    %727 = vmatpush.msra.mxu0 %v180
    %728 = vmatpush.msra.mxu0 %v177
    %729 = vmatpush.msra.mxu0 %v174
    %730 = vmatpush.msra.mxu0 %v171
    %731 = vmatpush.msra.mxu0 %v168
    %732 = vmatpush.msra.mxu0 %v165
    %733 = vmatpush.msra.mxu0 %v162
    %734 = vmatpush.msra.mxu0 %v159
    %735 = vmatpush.msra.mxu0 %v156
    %736 = vmatpush.msra.mxu0 %v153
    %737 = vmatpush.msra.mxu0 %v150
    %738 = vmatpush.msra.mxu0 %v147
    %739 = vmatpush.msra.mxu0 %v144
    %740 = vmatpush.msra.mxu0 %v141
    %741 = vmatmul.f32.gmra.mxu0 %v683
    %v742 = vpop.f32.mrf.mxu0
    %v743 = vadd.f32 0.0, %v742
    %744 = vdwg.mxu0
    %v745 = vadd.f32 %v679, %v703
    %v746 = vadd.f32 %v680, %v723
    %v747 = vxor.u32 %v745, 2147483648
    %v748 = vxor.u32 %v746, 2147483648
    %v749 = vmul.f32 %v747, 1.442695
    %v750 = vpow.pop %v749
    %v751 = vmul.f32 %v748, 1.442695
    %v752 = vpow.pop %v751
    %v753 = vadd.f32 %v750, 1.0
    %v754 = vadd.f32 %v752, 1.0
    %v755 = vrcp.pop %v753
    %v756 = vmul.f32 %v753, %v755
    %v757 = vsub.f32 1.0, %v756
    %v758 = vmul.f32 %v755, %v757
    %v759 = vadd.f32 %v755, %v758
    %vm760 = vweird.f32 %v753
    %vm761 = vweird.f32 %v755
    %vm762 = vmor %vm760, %vm761
    %v763 = vsel %vm762, %v755, %v759
    %v764 = vand.u32 2147483647, %v753
    %vm765 = vcmp.eq.f32.partialorder %v764, 8.507059e+37
    %v766 = vand.u32 %v753, 2147483648
    %v767 = vor.u32 1.1754944e-38, %v766
    %v768 = vsel %vm765, %v767, %v763
    %v769 = vmul.f32 1.0, %v768
    %v770 = vrcp.pop %v754
    %v771 = vmul.f32 %v754, %v770
    %v772 = vsub.f32 1.0, %v771
    %v773 = vmul.f32 %v770, %v772
    %v774 = vadd.f32 %v770, %v773
    %vm775 = vweird.f32 %v754
    %vm776 = vweird.f32 %v770
    %vm777 = vmor %vm775, %vm776
    %v778 = vsel %vm777, %v770, %v774
    %v779 = vand.u32 2147483647, %v754
    %vm780 = vcmp.eq.f32.partialorder %v779, 8.507059e+37
    %v781 = vand.u32 %v754, 2147483648
    %v782 = vor.u32 1.1754944e-38, %v781
    %v783 = vsel %vm780, %v782, %v778
    %v784 = vmul.f32 1.0, %v783
    %v785 = vadd.f32 %v743, %v189
    %v786 = vmul.f32 %v769, %v785
    %v787 = vadd.f32 %v681, %v786
    %v788 = vtanh.pop %v787
    %v789 = vsub.f32 1.0, %v784
    %v790 = vmul.f32 %v789, %v788
    %v791 = vmul.f32 %v784, %v683
    %v792 = vadd.f32 %v790, %v791
    %793 = vst [vmem:[%s5 + $0x8] sm:$0x3] %v792
    %v794 = vld [vmem:[#allocation2 + $0x18] sm:$0xc]
    %v795 = vld [vmem:[#allocation2 + $0x20] sm:$0xc]
    %v796 = vld [vmem:[#allocation2 + $0x28] sm:$0xc]
    %797 = vmatpush.msra.mxu0 %v184
    %798 = vmatpush.msra.mxu0 %v181
    %799 = vmatpush.msra.mxu0 %v178
    %800 = vmatpush.msra.mxu0 %v175
    %801 = vmatpush.msra.mxu0 %v172
    %802 = vmatpush.msra.mxu0 %v169
    %803 = vmatpush.msra.mxu0 %v166
    %804 = vmatpush.msra.mxu0 %v163
    %805 = vmatpush.msra.mxu0 %v160
    %806 = vmatpush.msra.mxu0 %v157
    %807 = vmatpush.msra.mxu0 %v154
    %808 = vmatpush.msra.mxu0 %v151
    %809 = vmatpush.msra.mxu0 %v148
    %810 = vmatpush.msra.mxu0 %v145
    %811 = vmatpush.msra.mxu0 %v142
    %812 = vmatpush.msra.mxu0 %v139
    %813 = vmatmul.f32.gmra.mxu0 %v792
    %v814 = vpop.f32.mrf.mxu0
    %v815 = vadd.f32 0.0, %v814
    %816 = vdwg.mxu0
    %817 = vmatpush.msra.mxu0 %v185
    %818 = vmatpush.msra.mxu0 %v182
    %819 = vmatpush.msra.mxu0 %v179
    %820 = vmatpush.msra.mxu0 %v176
    %821 = vmatpush.msra.mxu0 %v173
    %822 = vmatpush.msra.mxu0 %v170
    %823 = vmatpush.msra.mxu0 %v167
    %824 = vmatpush.msra.mxu0 %v164
    %825 = vmatpush.msra.mxu0 %v161
    %826 = vmatpush.msra.mxu0 %v158
    %827 = vmatpush.msra.mxu0 %v155
    %828 = vmatpush.msra.mxu0 %v152
    %829 = vmatpush.msra.mxu0 %v149
    %830 = vmatpush.msra.mxu0 %v146
    %831 = vmatpush.msra.mxu0 %v143
    %832 = vmatpush.msra.mxu0 %v140
    %833 = vmatmul.f32.gmra.mxu0 %v792
    %v834 = vpop.f32.mrf.mxu0
    %v835 = vadd.f32 0.0, %v834
    %836 = vdwg.mxu0
    %837 = vmatpush.msra.mxu0 %v186
    %838 = vmatpush.msra.mxu0 %v183
    %839 = vmatpush.msra.mxu0 %v180
    %840 = vmatpush.msra.mxu0 %v177
    %841 = vmatpush.msra.mxu0 %v174
    %842 = vmatpush.msra.mxu0 %v171
    %843 = vmatpush.msra.mxu0 %v168
    %844 = vmatpush.msra.mxu0 %v165
    %845 = vmatpush.msra.mxu0 %v162
    %846 = vmatpush.msra.mxu0 %v159
    %847 = vmatpush.msra.mxu0 %v156
    %848 = vmatpush.msra.mxu0 %v153
    %849 = vmatpush.msra.mxu0 %v150
    %850 = vmatpush.msra.mxu0 %v147
    %851 = vmatpush.msra.mxu0 %v144
    %852 = vmatpush.msra.mxu0 %v141
    %853 = vmatmul.f32.gmra.mxu0 %v792
    %v854 = vpop.f32.mrf.mxu0
    %v855 = vadd.f32 0.0, %v854
    %856 = vdwg.mxu0
    %v859 = vrot.slane %v815, 6
    %v860 = vrot.slane %v835, 6
    %v863 = vadd.f32 %v794, %v859
    %v864 = vadd.f32 %v795, %v860
    %v865 = vxor.u32 %v863, 2147483648
    %v866 = vxor.u32 %v864, 2147483648
    %v867 = vmul.f32 %v865, 1.442695
    %v868 = vpow.pop %v867
    %v869 = vmul.f32 %v866, 1.442695
    %v870 = vpow.pop %v869
    %v871 = vadd.f32 %v868, 1.0
    %v872 = vadd.f32 %v870, 1.0
    %v873 = vrcp.pop %v871
    %v874 = vmul.f32 %v871, %v873
    %v875 = vsub.f32 1.0, %v874
    %v876 = vmul.f32 %v873, %v875
    %v877 = vadd.f32 %v873, %v876
    %vm878 = vweird.f32 %v871
    %vm879 = vweird.f32 %v873
    %vm880 = vmor %vm878, %vm879
    %v881 = vsel %vm880, %v873, %v877
    %v882 = vand.u32 2147483647, %v871
    %vm883 = vcmp.eq.f32.partialorder %v882, 8.507059e+37
    %v884 = vand.u32 %v871, 2147483648
    %v885 = vor.u32 1.1754944e-38, %v884
    %v886 = vsel %vm883, %v885, %v881
    %v887 = vmul.f32 1.0, %v886
    %v888 = vrcp.pop %v872
    %v889 = vmul.f32 %v872, %v888
    %v890 = vsub.f32 1.0, %v889
    %v891 = vmul.f32 %v888, %v890
    %v892 = vadd.f32 %v888, %v891
    %vm893 = vweird.f32 %v872
    %vm894 = vweird.f32 %v888
    %vm895 = vmor %vm893, %vm894
    %v896 = vsel %vm895, %v888, %v892
    %v897 = vand.u32 2147483647, %v872
    %vm898 = vcmp.eq.f32.partialorder %v897, 8.507059e+37
    %v899 = vand.u32 %v872, 2147483648
    %v900 = vor.u32 1.1754944e-38, %v899
    %v901 = vsel %vm898, %v900, %v896
    %v902 = vmul.f32 1.0, %v901
    %v903 = vadd.f32 %v855, %v189
    %v905 = vrot.slane %v903, 6
    %v907 = vmul.f32 %v887, %v905
    %v908 = vadd.f32 %v796, %v907
    %v909 = vtanh.pop %v908
    %v910 = vsub.f32 1.0, %v902
    %v911 = vmul.f32 %v910, %v909
    %v913 = vrot.slane %v792, 6
    %v915 = vmul.f32 %v902, %v913
    %v916 = vadd.f32 %v911, %v915
    %917 = vst [vmem:[%s5 + $0x8] sm:$0xc] %v916
    %v918 = vld [vmem:[#allocation2 + $0x18] sm:$0x30]
    %v919 = vld [vmem:[#allocation2 + $0x20] sm:$0x30]
    %v920 = vld [vmem:[#allocation2 + $0x28] sm:$0x30]
    %v922 = vrot.slane %v916, 2
    %924 = vmatpush.msra.mxu0 %v184
    %925 = vmatpush.msra.mxu0 %v181
    %926 = vmatpush.msra.mxu0 %v178
    %927 = vmatpush.msra.mxu0 %v175
    %928 = vmatpush.msra.mxu0 %v172
    %929 = vmatpush.msra.mxu0 %v169
    %930 = vmatpush.msra.mxu0 %v166
    %931 = vmatpush.msra.mxu0 %v163
    %932 = vmatpush.msra.mxu0 %v160
    %933 = vmatpush.msra.mxu0 %v157
    %934 = vmatpush.msra.mxu0 %v154
    %935 = vmatpush.msra.mxu0 %v151
    %936 = vmatpush.msra.mxu0 %v148
    %937 = vmatpush.msra.mxu0 %v145
    %938 = vmatpush.msra.mxu0 %v142
    %939 = vmatpush.msra.mxu0 %v139
    %940 = vmatmul.f32.gmra.mxu0 %v922
    %v941 = vpop.f32.mrf.mxu0
    %v942 = vadd.f32 0.0, %v941
    %943 = vdwg.mxu0
    %944 = vmatpush.msra.mxu0 %v185
    %945 = vmatpush.msra.mxu0 %v182
    %946 = vmatpush.msra.mxu0 %v179
    %947 = vmatpush.msra.mxu0 %v176
    %948 = vmatpush.msra.mxu0 %v173
    %949 = vmatpush.msra.mxu0 %v170
    %950 = vmatpush.msra.mxu0 %v167
    %951 = vmatpush.msra.mxu0 %v164
    %952 = vmatpush.msra.mxu0 %v161
    %953 = vmatpush.msra.mxu0 %v158
    %954 = vmatpush.msra.mxu0 %v155
    %955 = vmatpush.msra.mxu0 %v152
    %956 = vmatpush.msra.mxu0 %v149
    %957 = vmatpush.msra.mxu0 %v146
    %958 = vmatpush.msra.mxu0 %v143
    %959 = vmatpush.msra.mxu0 %v140
    %960 = vmatmul.f32.gmra.mxu0 %v922
    %v961 = vpop.f32.mrf.mxu0
    %v962 = vadd.f32 0.0, %v961
    %963 = vdwg.mxu0
    %964 = vmatpush.msra.mxu0 %v186
    %965 = vmatpush.msra.mxu0 %v183
    %966 = vmatpush.msra.mxu0 %v180
    %967 = vmatpush.msra.mxu0 %v177
    %968 = vmatpush.msra.mxu0 %v174
    %969 = vmatpush.msra.mxu0 %v171
    %970 = vmatpush.msra.mxu0 %v168
    %971 = vmatpush.msra.mxu0 %v165
    %972 = vmatpush.msra.mxu0 %v162
    %973 = vmatpush.msra.mxu0 %v159
    %974 = vmatpush.msra.mxu0 %v156
    %975 = vmatpush.msra.mxu0 %v153
    %976 = vmatpush.msra.mxu0 %v150
    %977 = vmatpush.msra.mxu0 %v147
    %978 = vmatpush.msra.mxu0 %v144
    %979 = vmatpush.msra.mxu0 %v141
    %980 = vmatmul.f32.gmra.mxu0 %v922
    %v981 = vpop.f32.mrf.mxu0
    %v982 = vadd.f32 0.0, %v981
    %983 = vdwg.mxu0
    %v986 = vrot.slane %v942, 4
    %v987 = vrot.slane %v962, 4
    %v990 = vadd.f32 %v918, %v986
    %v991 = vadd.f32 %v919, %v987
    %v992 = vxor.u32 %v990, 2147483648
    %v993 = vxor.u32 %v991, 2147483648
    %v994 = vmul.f32 %v992, 1.442695
    %v995 = vpow.pop %v994
    %v996 = vmul.f32 %v993, 1.442695
    %v997 = vpow.pop %v996
    %v998 = vadd.f32 %v995, 1.0
    %v999 = vadd.f32 %v997, 1.0
    %v1000 = vrcp.pop %v998
    %v1001 = vmul.f32 %v998, %v1000
    %v1002 = vsub.f32 1.0, %v1001
    %v1003 = vmul.f32 %v1000, %v1002
    %v1004 = vadd.f32 %v1000, %v1003
    %vm1005 = vweird.f32 %v998
    %vm1006 = vweird.f32 %v1000
    %vm1007 = vmor %vm1005, %vm1006
    %v1008 = vsel %vm1007, %v1000, %v1004
    %v1009 = vand.u32 2147483647, %v998
    %vm1010 = vcmp.eq.f32.partialorder %v1009, 8.507059e+37
    %v1011 = vand.u32 %v998, 2147483648
    %v1012 = vor.u32 1.1754944e-38, %v1011
    %v1013 = vsel %vm1010, %v1012, %v1008
    %v1014 = vmul.f32 1.0, %v1013
    %v1015 = vrcp.pop %v999
    %v1016 = vmul.f32 %v999, %v1015
    %v1017 = vsub.f32 1.0, %v1016
    %v1018 = vmul.f32 %v1015, %v1017
    %v1019 = vadd.f32 %v1015, %v1018
    %vm1020 = vweird.f32 %v999
    %vm1021 = vweird.f32 %v1015
    %vm1022 = vmor %vm1020, %vm1021
    %v1023 = vsel %vm1022, %v1015, %v1019
    %v1024 = vand.u32 2147483647, %v999
    %vm1025 = vcmp.eq.f32.partialorder %v1024, 8.507059e+37
    %v1026 = vand.u32 %v999, 2147483648
    %v1027 = vor.u32 1.1754944e-38, %v1026
    %v1028 = vsel %vm1025, %v1027, %v1023
    %v1029 = vmul.f32 1.0, %v1028
    %v1030 = vadd.f32 %v982, %v189
    %v1032 = vrot.slane %v1030, 4
    %v1034 = vmul.f32 %v1014, %v1032
    %v1035 = vadd.f32 %v920, %v1034
    %v1036 = vtanh.pop %v1035
    %v1037 = vsub.f32 1.0, %v1029
    %v1038 = vmul.f32 %v1037, %v1036
    %v1039 = vrot.slane %v916, 6
    %v1041 = vmul.f32 %v1029, %v1039
    %v1042 = vadd.f32 %v1038, %v1041
    %1043 = vst [vmem:[%s5 + $0x8] sm:$0x30] %v1042
    %v1044 = vld [vmem:[#allocation2 + $0x18] sm:$0xc0]
    %v1045 = vld [vmem:[#allocation2 + $0x20] sm:$0xc0]
    %v1046 = vld [vmem:[#allocation2 + $0x28] sm:$0xc0]
    %v1048 = vrot.slane %v1042, 4
    %1050 = vmatpush.msra.mxu0 %v184
    %1051 = vmatpush.msra.mxu0 %v181
    %1052 = vmatpush.msra.mxu0 %v178
    %1053 = vmatpush.msra.mxu0 %v175
    %1054 = vmatpush.msra.mxu0 %v172
    %1055 = vmatpush.msra.mxu0 %v169
    %1056 = vmatpush.msra.mxu0 %v166
    %1057 = vmatpush.msra.mxu0 %v163
    %1058 = vmatpush.msra.mxu0 %v160
    %1059 = vmatpush.msra.mxu0 %v157
    %1060 = vmatpush.msra.mxu0 %v154
    %1061 = vmatpush.msra.mxu0 %v151
    %1062 = vmatpush.msra.mxu0 %v148
    %1063 = vmatpush.msra.mxu0 %v145
    %1064 = vmatpush.msra.mxu0 %v142
    %1065 = vmatpush.msra.mxu0 %v139
    %1066 = vmatmul.f32.gmra.mxu0 %v1048
    %v1067 = vpop.f32.mrf.mxu0
    %v1068 = vadd.f32 0.0, %v1067
    %1069 = vdwg.mxu0
    %1070 = vmatpush.msra.mxu0 %v185
    %1071 = vmatpush.msra.mxu0 %v182
    %1072 = vmatpush.msra.mxu0 %v179
    %1073 = vmatpush.msra.mxu0 %v176
    %1074 = vmatpush.msra.mxu0 %v173
    %1075 = vmatpush.msra.mxu0 %v170
    %1076 = vmatpush.msra.mxu0 %v167
    %1077 = vmatpush.msra.mxu0 %v164
    %1078 = vmatpush.msra.mxu0 %v161
    %1079 = vmatpush.msra.mxu0 %v158
    %1080 = vmatpush.msra.mxu0 %v155
    %1081 = vmatpush.msra.mxu0 %v152
    %1082 = vmatpush.msra.mxu0 %v149
    %1083 = vmatpush.msra.mxu0 %v146
    %1084 = vmatpush.msra.mxu0 %v143
    %1085 = vmatpush.msra.mxu0 %v140
    %1086 = vmatmul.f32.gmra.mxu0 %v1048
    %v1087 = vpop.f32.mrf.mxu0
    %v1088 = vadd.f32 0.0, %v1087
    %1089 = vdwg.mxu0
    %1090 = vmatpush.msra.mxu0 %v186
    %1091 = vmatpush.msra.mxu0 %v183
    %1092 = vmatpush.msra.mxu0 %v180
    %1093 = vmatpush.msra.mxu0 %v177
    %1094 = vmatpush.msra.mxu0 %v174
    %1095 = vmatpush.msra.mxu0 %v171
    %1096 = vmatpush.msra.mxu0 %v168
    %1097 = vmatpush.msra.mxu0 %v165
    %1098 = vmatpush.msra.mxu0 %v162
    %1099 = vmatpush.msra.mxu0 %v159
    %1100 = vmatpush.msra.mxu0 %v156
    %1101 = vmatpush.msra.mxu0 %v153
    %1102 = vmatpush.msra.mxu0 %v150
    %1103 = vmatpush.msra.mxu0 %v147
    %1104 = vmatpush.msra.mxu0 %v144
    %1105 = vmatpush.msra.mxu0 %v141
    %1106 = vmatmul.f32.gmra.mxu0 %v1048
    %v1107 = vpop.f32.mrf.mxu0
    %v1108 = vadd.f32 0.0, %v1107
    %1109 = vdwg.mxu0
    %v1112 = vrot.slane %v1068, 2
    %v1113 = vrot.slane %v1088, 2
    %v1116 = vadd.f32 %v1044, %v1112
    %v1117 = vadd.f32 %v1045, %v1113
    %v1118 = vxor.u32 %v1116, 2147483648
    %v1119 = vxor.u32 %v1117, 2147483648
    %v1120 = vmul.f32 %v1118, 1.442695
    %v1121 = vpow.pop %v1120
    %v1122 = vmul.f32 %v1119, 1.442695
    %v1123 = vpow.pop %v1122
    %v1124 = vadd.f32 %v1121, 1.0
    %v1125 = vadd.f32 %v1123, 1.0
    %v1126 = vrcp.pop %v1124
    %v1127 = vmul.f32 %v1124, %v1126
    %v1128 = vsub.f32 1.0, %v1127
    %v1129 = vmul.f32 %v1126, %v1128
    %v1130 = vadd.f32 %v1126, %v1129
    %vm1131 = vweird.f32 %v1124
    %vm1132 = vweird.f32 %v1126
    %vm1133 = vmor %vm1131, %vm1132
    %v1134 = vsel %vm1133, %v1126, %v1130
    %v1135 = vand.u32 2147483647, %v1124
    %vm1136 = vcmp.eq.f32.partialorder %v1135, 8.507059e+37
    %v1137 = vand.u32 %v1124, 2147483648
    %v1138 = vor.u32 1.1754944e-38, %v1137
    %v1139 = vsel %vm1136, %v1138, %v1134
    %v1140 = vmul.f32 1.0, %v1139
    %v1141 = vrcp.pop %v1125
    %v1142 = vmul.f32 %v1125, %v1141
    %v1143 = vsub.f32 1.0, %v1142
    %v1144 = vmul.f32 %v1141, %v1143
    %v1145 = vadd.f32 %v1141, %v1144
    %vm1146 = vweird.f32 %v1125
    %vm1147 = vweird.f32 %v1141
    %vm1148 = vmor %vm1146, %vm1147
    %v1149 = vsel %vm1148, %v1141, %v1145
    %v1150 = vand.u32 2147483647, %v1125
    %vm1151 = vcmp.eq.f32.partialorder %v1150, 8.507059e+37
    %v1152 = vand.u32 %v1125, 2147483648
    %v1153 = vor.u32 1.1754944e-38, %v1152
    %v1154 = vsel %vm1151, %v1153, %v1149
    %v1155 = vmul.f32 1.0, %v1154
    %v1156 = vadd.f32 %v1108, %v189
    %v1158 = vrot.slane %v1156, 2
    %v1160 = vmul.f32 %v1140, %v1158
    %v1161 = vadd.f32 %v1046, %v1160
    %v1162 = vtanh.pop %v1161
    %v1163 = vsub.f32 1.0, %v1155
    %v1164 = vmul.f32 %v1163, %v1162
    %v1165 = vrot.slane %v1042, 6
    %v1167 = vmul.f32 %v1155, %v1165
    %v1168 = vadd.f32 %v1164, %v1167
    %1169 = vst [vmem:[%s5 + $0x8] sm:$0xc0] %v1168
    %1170 = vst [vmem:[#allocation3 - $0x6] sm:$0xc0] %v1168
    // Predicated region
    $region22: #{encode_birnn_forward.1} parent=1 // pred_check
      _
    $region23: #{encode_birnn_forward.1} parent=1 // pred_check_branch
      %1172 = sbr.rel (0) target = $region25
    $region24: #{encode_birnn_forward.1} parent=1 // pred_region
      _
    $region25: #{encode_birnn_forward.1} parent=1 // pred_fallthru
      _
    // Predicated region
    $region26: #{encode_birnn_forward.1} parent=1 // pred_check
      _
    $region27: #{encode_birnn_forward.1} parent=1 // pred_check_branch
      %1174 = sbr.rel (0) target = $region29
    $region28: #{encode_birnn_forward.1} parent=1 // pred_region
      %1176 = vsyncadd [#allocation4], 0
      %s1178 = sshll.u32 [#allocation3], 4
      %s1179 = int_to_ptr.vmem [resolvable:$true] %s1178
      %s1180 = sshll.u32 %s6, 4
      %s1181 = int_to_ptr.hbm [resolvable:$true] %s1180
      %1183 = dma.vmem_to_hbm [thread:$0]  %s1179, 32, %s1181, [#allocation4]
    $region29: #{encode_birnn_forward.1} parent=1 // pred_fallthru
      _
    // Predicated region
    $region30: #{encode_birnn_forward.1} parent=1 // pred_check
      _
    $region31: #{encode_birnn_forward.1} parent=1 // pred_check_branch
      %1185 = sbr.rel (0) target = $region33
    $region32: #{encode_birnn_forward.1} parent=1 // pred_region
      _
    $region33: #{encode_birnn_forward.1} parent=1 // pred_fallthru
      _
    // Predicated region
    $region34: #{encode_birnn_forward.1} parent=1 // pred_check
      _
    $region35: #{encode_birnn_forward.1} parent=1 // pred_check_branch
      %1187 = sbr.rel (0) target = $region37
    $region36: #{encode_birnn_forward.1} parent=1 // pred_region
      %1189 = dma.done [#allocation4], 32
    $region37: #{encode_birnn_forward.1} parent=1 // pred_fallthru
      _
    %1190 = vsyncpa [#allocation4], 1

</llo_original>
